<compile_context>
chip_gen: v6e
topology: v6e:2x2x1
jax: 0.10.0
libtpu: 0.0.40
codegen_flags: <defaults>
</compile_context>

<pallas_src>
import numpy as np
import jax
import jax.numpy as jnp
from jax.experimental import pallas as pl
from jax.experimental.pallas import tpu as pltpu

WITH_BLOB_CONV = True
BLOB_LOSS_THRES = 0.5


def _ceil_to(x, m):
    return ((x + m - 1) // m) * m


# ----------------------------------------------------------------------------
# Kernel 1: evaluate M at the critical pixel set -> sampled M + exact stats.
# ----------------------------------------------------------------------------
def eval_m(scores_pad, ybounds, xbounds, ys_col, xs_row, H, W, h_b, w_b):
    """scores_pad : f32[CvP, R_pad] thresholded refine scores, class-major,
                    zero-padded on both axes.
       ybounds    : i32[2, R_pad]   row 0 = y1, row 1 = y2 (padded ROIs empty).
       xbounds    : i32[R_pad, 2]   col 0 = x1, col 1 = x2.
       ys_col     : i32[NYp, 1]     candidate y coords:
                                    [resize rows | 0 | y1s | y2s | -1 pad]
       xs_row     : i32[1, NXp]     candidate x coords (same layout for x).
       returns (m_samp f32[CvP, h_b, w_b] raw M at the resize grid,
                stats  f32[CvP, 2]        exact per-class (min, max) over H*W).
    """
    CvP, R_pad = scores_pad.shape

    def kernel(scores_ref, yb_ref, xb_ref, ys_ref, xs_ref, m_ref, st_ref):
        ys = ys_ref[...]                          # [NYp, 1] i32
        xs = xs_ref[...]                          # [1, NXp] i32
        y1 = yb_ref[0:1, :]                       # [1, R_pad]
        y2 = yb_ref[1:2, :]
        x1 = xb_ref[:, 0:1]                       # [R_pad, 1]
        x2 = xb_ref[:, 1:2]

        # Dense {0,1} factor matrices across ROIs (review item 2).
        in_yt = ((y1 <= ys) & (ys < y2)).astype(jnp.float32)   # [NYp, R_pad]
        in_x = ((x1 <= xs) & (xs < x2)).astype(jnp.float32)    # [R_pad, NXp]

        # Candidate validity: -1 padding and out-of-image breakpoints must not
        # bias the min/max.
        vy = (ys >= 0) & (ys < H)                               # [NYp, 1]
        vx = (xs >= 0) & (xs < W)                               # [1, NXp]
        valid = vy & vx                                         # [NYp, NXp]

        # Per class: scale the y-factor columns by the ROI scores and contract
        # over ROIs on the MXU (review item 3).  CvP is small and static.
        # TODO(synk): for CvP >> 8 switch to one batched dot:
        #   (scores[:,None,:] * in_yt[None]).reshape(CvP*NYp, R_pad) @ in_x
        for c in range(CvP):
            wy = in_yt * scores_ref[c:c + 1, :]                 # [NYp, R_pad]
            mc = jnp.dot(wy, in_x,
                         preferred_element_type=jnp.float32)    # [NYp, NXp]
            st_ref[c, 0] = jnp.min(jnp.where(valid, mc, jnp.inf))
            st_ref[c, 1] = jnp.max(jnp.where(valid, mc, -jnp.inf))
            # First h_b rows / w_b cols of the candidate lists are the
            # nearest-neighbor resize sample coordinates.
            m_ref[c, :, :] = mc[:h_b, :w_b]

    return pl.pallas_call(
        kernel,
        out_shape=(jax.ShapeDtypeStruct((CvP, h_b, w_b), jnp.float32),
                   jax.ShapeDtypeStruct((CvP, 2), jnp.float32)),
        in_specs=[pl.BlockSpec(memory_space=pltpu.MemorySpace.VMEM)] * 5,
        out_specs=(pl.BlockSpec(memory_space=pltpu.MemorySpace.VMEM),
                   pl.BlockSpec(memory_space=pltpu.MemorySpace.SMEM)),
    )(scores_pad, ybounds, xbounds, ys_col, xs_row)


# ----------------------------------------------------------------------------
# Kernel 2: loss_calculate_class with the min/max normalization fused in.
# ----------------------------------------------------------------------------
def class_loss(m_res, stats_v, blob_valid, blob_invalid, thres):
    """m_res        : f32[Cv, h, w] RAW (unnormalized) M at the resize grid.
       stats_v      : f32[Cv, 2]    per-class (min, max) over full-res M.
       blob_valid   : f32[Cv, h, w] blob_conv rows at valid classes.
       blob_invalid : f32[Cn, h, w] blob_conv rows at non-valid classes.
       returns scalar loss."""
    # (x - min)/(max - min + 1e-6) is monotone per class, so normalizing the
    # per-axis maxes equals taking maxes of the normalized map (exact).
    # TODO(synk): at production h/w sizes, re-layout these blocks lane-dense
    # (last dim >= 128, pad with max-neutral values) and tile over classes
    # (review item 9); at 16x16 this is noise.
    def kernel(m_ref, st_ref, bv_ref, bn_ref, out_ref):
        eps = 1e-6
        bv = jnp.clip(bv_ref[...], eps, 1.0 - eps)
        bn = jnp.clip(bn_ref[...], eps, 1.0 - eps)
        m = m_ref[...]

        mn = st_ref[:, 0:1]                      # [Cv, 1]
        mx = st_ref[:, 1:2]
        den = mx - mn + 1e-6

        max_x_blob_v = jnp.max(bv, axis=1)       # max over h -> [Cv, w]
        max_y_blob_v = jnp.max(bv, axis=2)       # max over w -> [Cv, h]
        max_x_blob_n = jnp.max(bn, axis=1)       # [Cn, w]
        max_y_blob_n = jnp.max(bn, axis=2)       # [Cn, h]

        max_x_weight = (jnp.max(m, axis=1) - mn) / den   # [Cv, w]
        max_y_weight = (jnp.max(m, axis=2) - mn) / den   # [Cv, h]
        max_x_label = (max_x_weight >= thres).astype(jnp.float32)
        max_y_label = (max_y_weight >= thres).astype(jnp.float32)

        lx_p = jnp.mean(-jnp.log(max_x_blob_v) * max_x_label)
        lx_n = jnp.mean(-jnp.log(1.0 - max_x_blob_n))
        ly_p = jnp.mean(-jnp.log(max_y_blob_v) * max_y_label)
        ly_n = jnp.mean(-jnp.log(1.0 - max_y_blob_n))

        out_ref[0] = lx_p + lx_n + ly_p + ly_n

    out = pl.pallas_call(
        kernel,
        out_shape=jax.ShapeDtypeStruct((1,), jnp.float32),
        in_specs=[pl.BlockSpec(memory_space=pltpu.MemorySpace.VMEM)] * 4,
        out_specs=pl.BlockSpec(memory_space=pltpu.MemorySpace.SMEM),
    )(m_res, stats_v, blob_valid, blob_invalid)
    return out[0]


# ----------------------------------------------------------------------------
# Full forward (glue in plain JAX / numpy; hot paths in the two kernels above)
# ----------------------------------------------------------------------------
def blob_loss_forward(mil_result, refine_result, blob_conv, rois, labels_np,
                      original_shape):
    del mil_result  # unused by the reference forward as well
    H, W = original_shape

    # average of the refinement branches
    average_refine = sum(refine_result) / len(refine_result)      # [R, C]
    if average_refine.shape[-1] != labels_np.shape[-1]:
        average_refine = average_refine[:, 1:]

    labels0 = np.asarray(labels_np)[0]
    valid_class = np.where(labels0 == 1)[0]
    no_valid_class = np.where(labels0 != 1)[0]
    Cv = int(valid_class.shape[0])
    R = int(rois.shape[0])

    # thresholded scores (M_scores[M_scores < 0.3] = 0), class-major, padded
    valid_scores = average_refine[:, valid_class]                  # [R, Cv]
    s = jnp.where(valid_scores < 0.3, 0.0, valid_scores).astype(jnp.float32)
    CvP = _ceil_to(max(Cv, 8), 8)
    R_pad = _ceil_to(max(R, 128), 128)   # full MXU K tile; padded ROIs inert
    scores_pad = (jnp.zeros((CvP, R_pad), jnp.float32)
                  .at[:Cv, :R].set(jnp.transpose(s)))

    # boxes: rois[:, 1:] = (x1, y1, x2, y2); int() truncation (non-neg coords)
    boxes = rois[:, 1:5].astype(jnp.int32)                         # [R, 4]
    x1, y1, x2, y2 = boxes[:, 0], boxes[:, 1], boxes[:, 2], boxes[:, 3]

    def pad1(v, n, fill):
        return jnp.concatenate([v, jnp.full((n - v.shape[0],), fill, v.dtype)])

    ybounds = jnp.stack([pad1(y1, R_pad, 0), pad1(y2, R_pad, 0)], axis=0)  # [2,R_pad]
    xbounds = jnp.stack([pad1(x1, R_pad, 0), pad1(x2, R_pad, 0)], axis=1)  # [R_pad,2]

    # nearest-neighbor resize sample coords (matches F.interpolate 'nearest')
    h_b, w_b = blob_conv.shape[-2:]
    idx_y = np.minimum(np.floor(np.arange(h_b) * (H / h_b)), H - 1).astype(np.int32)
    idx_x = np.minimum(np.floor(np.arange(w_b) * (W / w_b)), W - 1).astype(np.int32)

    # candidate coordinate lists: resize samples first, then one representative
    # per arrangement interval ({0} + every box edge); pad with -1 (masked)
    ys_list = jnp.concatenate([jnp.asarray(idx_y), jnp.zeros((1,), jnp.int32), y1, y2])
    xs_list = jnp.concatenate([jnp.asarray(idx_x), jnp.zeros((1,), jnp.int32), x1, x2])
    NYp = _ceil_to(int(ys_list.shape[0]), 8)
    NXp = _ceil_to(int(xs_list.shape[0]), 128)
    ys_col = (jnp.full((NYp,), -1, jnp.int32)
              .at[:ys_list.shape[0]].set(ys_list).reshape(NYp, 1))
    xs_row = (jnp.full((NXp,), -1, jnp.int32)
              .at[:xs_list.shape[0]].set(xs_list).reshape(1, NXp))

    # --- Pallas kernel 1: sampled M + exact per-class min/max stats ---
    m_samp, stats = eval_m(scores_pad, ybounds, xbounds, ys_col, xs_row,
                           H, W, h_b, w_b)
    m_res = m_samp[:Cv]                                            # [Cv, h_b, w_b]
    stats_v = stats[:Cv]                                           # [Cv, 2]

    # class gather (static numpy indices derived from labels)
    blob_valid = blob_conv[valid_class]                            # [Cv, h_b, w_b]
    blob_invalid = blob_conv[no_valid_class]                       # [Cn, h_b, w_b]

    if WITH_BLOB_CONV:
        # --- Pallas kernel 2: fused normalization + loss_calculate_class ---
        return class_loss(m_res, stats_v, blob_valid, blob_invalid, BLOB_LOSS_THRES)
    # TODO(synk): loss_calculate_direct branch not exercised (WITH_BLOB_CONV=True)
    raise NotImplementedError


if __name__ == "__main__":
    key = jax.random.PRNGKey(0)
    H, W = 32, 32            # original image shape
    C = 4                    # number of classes
    R = 6                    # number of ROIs
    h_b, w_b = 16, 16        # blob_conv spatial size

    k_ref, k_box1, k_box2, k_box3, k_box4, k_blob = jax.random.split(key, 6)

    # refinement branch scores (3 branches), already "softmax-like" in [0, 1]
    refine_result = [
        jax.random.uniform(k, (R, C), dtype=jnp.float32)
        for k in jax.random.split(k_ref, 3)
    ]

    # labels: class is valid iff label == 1
    labels = np.array([[1.0, 0.0, 1.0, 0.0]], dtype=np.float32)

    # ROIs: [batch_idx, x1, y1, x2, y2]
    xa = jax.random.randint(k_box1, (R,), 0, W - 1)
    xb = jax.random.randint(k_box2, (R,), 0, W - 1)
    ya = jax.random.randint(k_box3, (R,), 0, H - 1)
    yb = jax.random.randint(k_box4, (R,), 0, H - 1)
    x1 = jnp.minimum(xa, xb)
    x2 = jnp.minimum(jnp.maximum(xa, xb) + 1, W)
    y1 = jnp.minimum(ya, yb)
    y2 = jnp.minimum(jnp.maximum(ya, yb) + 1, H)
    rois = jnp.stack(
        [jnp.zeros((R,), jnp.int32), x1, y1, x2, y2], axis=1
    ).astype(jnp.float32)

    # blob_conv: per-class probability maps in (0, 1), shape [C, h_b, w_b]
    blob_conv = jax.random.uniform(
        k_blob, (C, h_b, w_b), dtype=jnp.float32, minval=0.01, maxval=0.99
    )

    mil_result = None  # unused by the forward pass

    loss = blob_loss_forward(
        mil_result, refine_result, blob_conv, rois, labels, (H, W)
    )
    loss = jax.block_until_ready(loss)
    assert np.isfinite(float(loss))
    print("KERNEL_OK")
</pallas_src>

<mosaic_0001>
module attributes {stable_mosaic.version = 11 : i64} {
  func.func @kernel(%arg0: memref<8x128xf32, #tpu.memory_space<vmem>>, %arg1: memref<2x128xi32, #tpu.memory_space<vmem>>, %arg2: memref<128x2xi32, #tpu.memory_space<vmem>>, %arg3: memref<32x1xi32, #tpu.memory_space<vmem>>, %arg4: memref<1x128xi32, #tpu.memory_space<vmem>>, %arg5: memref<8x16x16xf32, #tpu.memory_space<vmem>>, %arg6: memref<8x2xf32, #tpu.memory_space<smem>>) attributes {dimension_semantics = [], scalar_prefetch = 0 : i64, scratch_operands = 0 : i64, tpu.core_type = #tpu.core_type<tc>} {
    %c0 = arith.constant 0 : index
    %c0_0 = arith.constant 0 : index
    %0 = vector.load %arg3[%c0, %c0_0] : memref<32x1xi32, #tpu.memory_space<vmem>>, vector<32x1xi32>
    %c0_1 = arith.constant 0 : index
    %c0_2 = arith.constant 0 : index
    %1 = vector.load %arg4[%c0_1, %c0_2] : memref<1x128xi32, #tpu.memory_space<vmem>>, vector<1x128xi32>
    %c0_3 = arith.constant 0 : index
    %c0_4 = arith.constant 0 : index
    %2 = vector.load %arg1[%c0_3, %c0_4] : memref<2x128xi32, #tpu.memory_space<vmem>>, vector<1x128xi32>
    %c1 = arith.constant 1 : index
    %c0_5 = arith.constant 0 : index
    %3 = vector.load %arg1[%c1, %c0_5] : memref<2x128xi32, #tpu.memory_space<vmem>>, vector<1x128xi32>
    %c0_6 = arith.constant 0 : index
    %c0_7 = arith.constant 0 : index
    %4 = vector.load %arg2[%c0_6, %c0_7] : memref<128x2xi32, #tpu.memory_space<vmem>>, vector<128x1xi32>
    %c0_8 = arith.constant 0 : index
    %c1_9 = arith.constant 1 : index
    %5 = vector.load %arg2[%c0_8, %c1_9] : memref<128x2xi32, #tpu.memory_space<vmem>>, vector<128x1xi32>
    %6 = vector.broadcast %2 : vector<1x128xi32> to vector<32x128xi32>
    %7 = vector.broadcast %0 : vector<32x1xi32> to vector<32x128xi32>
    %8 = arith.cmpi sle, %6, %7 : vector<32x128xi32>
    %9 = vector.broadcast %0 : vector<32x1xi32> to vector<32x128xi32>
    %10 = vector.broadcast %3 : vector<1x128xi32> to vector<32x128xi32>
    %11 = arith.cmpi slt, %9, %10 : vector<32x128xi32>
    %12 = arith.andi %8, %11 : vector<32x128xi1>
    %13 = arith.extui %12 : vector<32x128xi1> to vector<32x128xi32>
    %14 = arith.sitofp %13 : vector<32x128xi32> to vector<32x128xf32>
    %15 = vector.broadcast %4 : vector<128x1xi32> to vector<128x128xi32>
    %16 = vector.broadcast %1 : vector<1x128xi32> to vector<128x128xi32>
    %17 = arith.cmpi sle, %15, %16 : vector<128x128xi32>
    %18 = vector.broadcast %1 : vector<1x128xi32> to vector<128x128xi32>
    %19 = vector.broadcast %5 : vector<128x1xi32> to vector<128x128xi32>
    %20 = arith.cmpi slt, %18, %19 : vector<128x128xi32>
    %21 = arith.andi %17, %20 : vector<128x128xi1>
    %22 = arith.extui %21 : vector<128x128xi1> to vector<128x128xi32>
    %23 = arith.sitofp %22 : vector<128x128xi32> to vector<128x128xf32>
    %c0_i32 = arith.constant 0 : i32
    %24 = vector.broadcast %c0_i32 : i32 to vector<32x1xi32>
    %25 = arith.cmpi sge, %0, %24 : vector<32x1xi32>
    %c32_i32 = arith.constant 32 : i32
    %26 = vector.broadcast %c32_i32 : i32 to vector<32x1xi32>
    %27 = arith.cmpi slt, %0, %26 : vector<32x1xi32>
    %28 = arith.andi %25, %27 : vector<32x1xi1>
    %c0_i32_10 = arith.constant 0 : i32
    %29 = vector.broadcast %c0_i32_10 : i32 to vector<1x128xi32>
    %30 = arith.cmpi sge, %1, %29 : vector<1x128xi32>
    %c32_i32_11 = arith.constant 32 : i32
    %31 = vector.broadcast %c32_i32_11 : i32 to vector<1x128xi32>
    %32 = arith.cmpi slt, %1, %31 : vector<1x128xi32>
    %33 = arith.andi %30, %32 : vector<1x128xi1>
    %34 = vector.broadcast %28 : vector<32x1xi1> to vector<32x128xi1>
    %35 = vector.broadcast %33 : vector<1x128xi1> to vector<32x128xi1>
    %36 = arith.andi %34, %35 : vector<32x128xi1>
    %c0_12 = arith.constant 0 : index
    %c0_13 = arith.constant 0 : index
    %37 = vector.load %arg0[%c0_12, %c0_13] : memref<8x128xf32, #tpu.memory_space<vmem>>, vector<1x128xf32>
    %38 = vector.broadcast %37 : vector<1x128xf32> to vector<32x128xf32>
    %39 = arith.mulf %14, %38 : vector<32x128xf32>
    %cst = arith.constant dense<0.000000e+00> : vector<32x128xf32>
    %40 = tpu.matmul %39, %23, %cst {dimension_numbers = #tpu.dot_dimension_numbers<[1], [0], [0], [1], [0, 0, 1, 1], [], []>} : vector<32x128xf32>, vector<128x128xf32>, vector<32x128xf32> -> vector<32x128xf32>
    %cst_14 = arith.constant 0x7F800000 : f32
    %41 = vector.broadcast %cst_14 : f32 to vector<32x128xf32>
    %42 = arith.select %36, %40, %41 : vector<32x128xi1>, vector<32x128xf32>
    %43 = vector.shape_cast %42 : vector<32x128xf32> to vector<1x32x128xf32>
    %cst_15 = arith.constant dense<0x7F800000> : vector<1xf32>
    %44 = vector.multi_reduction <minimumf>, %43, %cst_15 [1, 2] : vector<1x32x128xf32> to vector<1xf32>
    %45 = vector.shape_cast %44 : vector<1xf32> to vector<1x1x1xf32>
    %46 = vector.extract %45[0, 0, 0] : f32 from vector<1x1x1xf32>
    %c0_16 = arith.constant 0 : index
    %c0_17 = arith.constant 0 : index
    %47 = memref.load %arg6[%c0_16, %c0_17] : memref<8x2xf32, #tpu.memory_space<smem>>
    memref.store %46, %arg6[%c0_16, %c0_17] : memref<8x2xf32, #tpu.memory_space<smem>>
    %cst_18 = arith.constant 0xFF800000 : f32
    %48 = vector.broadcast %cst_18 : f32 to vector<32x128xf32>
    %49 = arith.select %36, %40, %48 : vector<32x128xi1>, vector<32x128xf32>
    %50 = vector.shape_cast %49 : vector<32x128xf32> to vector<1x32x128xf32>
    %cst_19 = arith.constant dense<0xFF800000> : vector<1xf32>
    %51 = vector.multi_reduction <maximumf>, %50, %cst_19 [1, 2] : vector<1x32x128xf32> to vector<1xf32>
    %52 = vector.shape_cast %51 : vector<1xf32> to vector<1x1x1xf32>
    %53 = vector.extract %52[0, 0, 0] : f32 from vector<1x1x1xf32>
    %c0_20 = arith.constant 0 : index
    %c1_21 = arith.constant 1 : index
    %54 = memref.load %arg6[%c0_20, %c1_21] : memref<8x2xf32, #tpu.memory_space<smem>>
    memref.store %53, %arg6[%c0_20, %c1_21] : memref<8x2xf32, #tpu.memory_space<smem>>
    %55 = vector.extract_strided_slice %40 {offsets = [0, 0], sizes = [16, 16], strides = [1, 1]} : vector<32x128xf32> to vector<16x16xf32>
    %c0_22 = arith.constant 0 : index
    %c0_23 = arith.constant 0 : index
    %c0_24 = arith.constant 0 : index
    %56 = vector.load %arg5[%c0_22, %c0_23, %c0_24] : memref<8x16x16xf32, #tpu.memory_space<vmem>>, vector<1x16x16xf32>
    %57 = vector.shape_cast %56 : vector<1x16x16xf32> to vector<16x16xf32>
    %58 = vector.shape_cast %55 : vector<16x16xf32> to vector<1x16x16xf32>
    tpu.vector_store %arg5[%c0_22, %c0_23, %c0_24], %58 {strides = array<i32>} : memref<8x16x16xf32, #tpu.memory_space<vmem>>, vector<1x16x16xf32>,
    %c1_25 = arith.constant 1 : index
    %c0_26 = arith.constant 0 : index
    %59 = vector.load %arg0[%c1_25, %c0_26] : memref<8x128xf32, #tpu.memory_space<vmem>>, vector<1x128xf32>
    %60 = vector.broadcast %59 : vector<1x128xf32> to vector<32x128xf32>
    %61 = arith.mulf %14, %60 : vector<32x128xf32>
    %cst_27 = arith.constant dense<0.000000e+00> : vector<32x128xf32>
    %62 = tpu.matmul %61, %23, %cst_27 {dimension_numbers = #tpu.dot_dimension_numbers<[1], [0], [0], [1], [0, 0, 1, 1], [], []>} : vector<32x128xf32>, vector<128x128xf32>, vector<32x128xf32> -> vector<32x128xf32>
    %cst_28 = arith.constant 0x7F800000 : f32
    %63 = vector.broadcast %cst_28 : f32 to vector<32x128xf32>
    %64 = arith.select %36, %62, %63 : vector<32x128xi1>, vector<32x128xf32>
    %65 = vector.shape_cast %64 : vector<32x128xf32> to vector<1x32x128xf32>
    %cst_29 = arith.constant dense<0x7F800000> : vector<1xf32>
    %66 = vector.multi_reduction <minimumf>, %65, %cst_29 [1, 2] : vector<1x32x128xf32> to vector<1xf32>
    %67 = vector.shape_cast %66 : vector<1xf32> to vector<1x1x1xf32>
    %68 = vector.extract %67[0, 0, 0] : f32 from vector<1x1x1xf32>
    %c1_30 = arith.constant 1 : index
    %c0_31 = arith.constant 0 : index
    %69 = memref.load %arg6[%c1_30, %c0_31] : memref<8x2xf32, #tpu.memory_space<smem>>
    memref.store %68, %arg6[%c1_30, %c0_31] : memref<8x2xf32, #tpu.memory_space<smem>>
    %cst_32 = arith.constant 0xFF800000 : f32
    %70 = vector.broadcast %cst_32 : f32 to vector<32x128xf32>
    %71 = arith.select %36, %62, %70 : vector<32x128xi1>, vector<32x128xf32>
    %72 = vector.shape_cast %71 : vector<32x128xf32> to vector<1x32x128xf32>
    %cst_33 = arith.constant dense<0xFF800000> : vector<1xf32>
    %73 = vector.multi_reduction <maximumf>, %72, %cst_33 [1, 2] : vector<1x32x128xf32> to vector<1xf32>
    %74 = vector.shape_cast %73 : vector<1xf32> to vector<1x1x1xf32>
    %75 = vector.extract %74[0, 0, 0] : f32 from vector<1x1x1xf32>
    %c1_34 = arith.constant 1 : index
    %c1_35 = arith.constant 1 : index
    %76 = memref.load %arg6[%c1_34, %c1_35] : memref<8x2xf32, #tpu.memory_space<smem>>
    memref.store %75, %arg6[%c1_34, %c1_35] : memref<8x2xf32, #tpu.memory_space<smem>>
    %77 = vector.extract_strided_slice %62 {offsets = [0, 0], sizes = [16, 16], strides = [1, 1]} : vector<32x128xf32> to vector<16x16xf32>
    %c1_36 = arith.constant 1 : index
    %c0_37 = arith.constant 0 : index
    %c0_38 = arith.constant 0 : index
    %78 = vector.load %arg5[%c1_36, %c0_37, %c0_38] : memref<8x16x16xf32, #tpu.memory_space<vmem>>, vector<1x16x16xf32>
    %79 = vector.shape_cast %78 : vector<1x16x16xf32> to vector<16x16xf32>
    %80 = vector.shape_cast %77 : vector<16x16xf32> to vector<1x16x16xf32>
    tpu.vector_store %arg5[%c1_36, %c0_37, %c0_38], %80 {strides = array<i32>} : memref<8x16x16xf32, #tpu.memory_space<vmem>>, vector<1x16x16xf32>,
    %c2 = arith.constant 2 : index
    %c0_39 = arith.constant 0 : index
    %81 = vector.load %arg0[%c2, %c0_39] : memref<8x128xf32, #tpu.memory_space<vmem>>, vector<1x128xf32>
    %82 = vector.broadcast %81 : vector<1x128xf32> to vector<32x128xf32>
    %83 = arith.mulf %14, %82 : vector<32x128xf32>
    %cst_40 = arith.constant dense<0.000000e+00> : vector<32x128xf32>
    %84 = tpu.matmul %83, %23, %cst_40 {dimension_numbers = #tpu.dot_dimension_numbers<[1], [0], [0], [1], [0, 0, 1, 1], [], []>} : vector<32x128xf32>, vector<128x128xf32>, vector<32x128xf32> -> vector<32x128xf32>
    %cst_41 = arith.constant 0x7F800000 : f32
    %85 = vector.broadcast %cst_41 : f32 to vector<32x128xf32>
    %86 = arith.select %36, %84, %85 : vector<32x128xi1>, vector<32x128xf32>
    %87 = vector.shape_cast %86 : vector<32x128xf32> to vector<1x32x128xf32>
    %cst_42 = arith.constant dense<0x7F800000> : vector<1xf32>
    %88 = vector.multi_reduction <minimumf>, %87, %cst_42 [1, 2] : vector<1x32x128xf32> to vector<1xf32>
    %89 = vector.shape_cast %88 : vector<1xf32> to vector<1x1x1xf32>
    %90 = vector.extract %89[0, 0, 0] : f32 from vector<1x1x1xf32>
    %c2_43 = arith.constant 2 : index
    %c0_44 = arith.constant 0 : index
    %91 = memref.load %arg6[%c2_43, %c0_44] : memref<8x2xf32, #tpu.memory_space<smem>>
    memref.store %90, %arg6[%c2_43, %c0_44] : memref<8x2xf32, #tpu.memory_space<smem>>
    %cst_45 = arith.constant 0xFF800000 : f32
    %92 = vector.broadcast %cst_45 : f32 to vector<32x128xf32>
    %93 = arith.select %36, %84, %92 : vector<32x128xi1>, vector<32x128xf32>
    %94 = vector.shape_cast %93 : vector<32x128xf32> to vector<1x32x128xf32>
    %cst_46 = arith.constant dense<0xFF800000> : vector<1xf32>
    %95 = vector.multi_reduction <maximumf>, %94, %cst_46 [1, 2] : vector<1x32x128xf32> to vector<1xf32>
    %96 = vector.shape_cast %95 : vector<1xf32> to vector<1x1x1xf32>
    %97 = vector.extract %96[0, 0, 0] : f32 from vector<1x1x1xf32>
    %c2_47 = arith.constant 2 : index
    %c1_48 = arith.constant 1 : index
    %98 = memref.load %arg6[%c2_47, %c1_48] : memref<8x2xf32, #tpu.memory_space<smem>>
    memref.store %97, %arg6[%c2_47, %c1_48] : memref<8x2xf32, #tpu.memory_space<smem>>
    %99 = vector.extract_strided_slice %84 {offsets = [0, 0], sizes = [16, 16], strides = [1, 1]} : vector<32x128xf32> to vector<16x16xf32>
    %c2_49 = arith.constant 2 : index
    %c0_50 = arith.constant 0 : index
    %c0_51 = arith.constant 0 : index
    %100 = vector.load %arg5[%c2_49, %c0_50, %c0_51] : memref<8x16x16xf32, #tpu.memory_space<vmem>>, vector<1x16x16xf32>
    %101 = vector.shape_cast %100 : vector<1x16x16xf32> to vector<16x16xf32>
    %102 = vector.shape_cast %99 : vector<16x16xf32> to vector<1x16x16xf32>
    tpu.vector_store %arg5[%c2_49, %c0_50, %c0_51], %102 {strides = array<i32>} : memref<8x16x16xf32, #tpu.memory_space<vmem>>, vector<1x16x16xf32>,
    %c3 = arith.constant 3 : index
    %c0_52 = arith.constant 0 : index
    %103 = vector.load %arg0[%c3, %c0_52] : memref<8x128xf32, #tpu.memory_space<vmem>>, vector<1x128xf32>
    %104 = vector.broadcast %103 : vector<1x128xf32> to vector<32x128xf32>
    %105 = arith.mulf %14, %104 : vector<32x128xf32>
    %cst_53 = arith.constant dense<0.000000e+00> : vector<32x128xf32>
    %106 = tpu.matmul %105, %23, %cst_53 {dimension_numbers = #tpu.dot_dimension_numbers<[1], [0], [0], [1], [0, 0, 1, 1], [], []>} : vector<32x128xf32>, vector<128x128xf32>, vector<32x128xf32> -> vector<32x128xf32>
    %cst_54 = arith.constant 0x7F800000 : f32
    %107 = vector.broadcast %cst_54 : f32 to vector<32x128xf32>
    %108 = arith.select %36, %106, %107 : vector<32x128xi1>, vector<32x128xf32>
    %109 = vector.shape_cast %108 : vector<32x128xf32> to vector<1x32x128xf32>
    %cst_55 = arith.constant dense<0x7F800000> : vector<1xf32>
    %110 = vector.multi_reduction <minimumf>, %109, %cst_55 [1, 2] : vector<1x32x128xf32> to vector<1xf32>
    %111 = vector.shape_cast %110 : vector<1xf32> to vector<1x1x1xf32>
    %112 = vector.extract %111[0, 0, 0] : f32 from vector<1x1x1xf32>
    %c3_56 = arith.constant 3 : index
    %c0_57 = arith.constant 0 : index
    %113 = memref.load %arg6[%c3_56, %c0_57] : memref<8x2xf32, #tpu.memory_space<smem>>
    memref.store %112, %arg6[%c3_56, %c0_57] : memref<8x2xf32, #tpu.memory_space<smem>>
    %cst_58 = arith.constant 0xFF800000 : f32
    %114 = vector.broadcast %cst_58 : f32 to vector<32x128xf32>
    %115 = arith.select %36, %106, %114 : vector<32x128xi1>, vector<32x128xf32>
    %116 = vector.shape_cast %115 : vector<32x128xf32> to vector<1x32x128xf32>
    %cst_59 = arith.constant dense<0xFF800000> : vector<1xf32>
    %117 = vector.multi_reduction <maximumf>, %116, %cst_59 [1, 2] : vector<1x32x128xf32> to vector<1xf32>
    %118 = vector.shape_cast %117 : vector<1xf32> to vector<1x1x1xf32>
    %119 = vector.extract %118[0, 0, 0] : f32 from vector<1x1x1xf32>
    %c3_60 = arith.constant 3 : index
    %c1_61 = arith.constant 1 : index
    %120 = memref.load %arg6[%c3_60, %c1_61] : memref<8x2xf32, #tpu.memory_space<smem>>
    memref.store %119, %arg6[%c3_60, %c1_61] : memref<8x2xf32, #tpu.memory_space<smem>>
    %121 = vector.extract_strided_slice %106 {offsets = [0, 0], sizes = [16, 16], strides = [1, 1]} : vector<32x128xf32> to vector<16x16xf32>
    %c3_62 = arith.constant 3 : index
    %c0_63 = arith.constant 0 : index
    %c0_64 = arith.constant 0 : index
    %122 = vector.load %arg5[%c3_62, %c0_63, %c0_64] : memref<8x16x16xf32, #tpu.memory_space<vmem>>, vector<1x16x16xf32>
    %123 = vector.shape_cast %122 : vector<1x16x16xf32> to vector<16x16xf32>
    %124 = vector.shape_cast %121 : vector<16x16xf32> to vector<1x16x16xf32>
    tpu.vector_store %arg5[%c3_62, %c0_63, %c0_64], %124 {strides = array<i32>} : memref<8x16x16xf32, #tpu.memory_space<vmem>>, vector<1x16x16xf32>,
    %c4 = arith.constant 4 : index
    %c0_65 = arith.constant 0 : index
    %125 = vector.load %arg0[%c4, %c0_65] : memref<8x128xf32, #tpu.memory_space<vmem>>, vector<1x128xf32>
    %126 = vector.broadcast %125 : vector<1x128xf32> to vector<32x128xf32>
    %127 = arith.mulf %14, %126 : vector<32x128xf32>
    %cst_66 = arith.constant dense<0.000000e+00> : vector<32x128xf32>
    %128 = tpu.matmul %127, %23, %cst_66 {dimension_numbers = #tpu.dot_dimension_numbers<[1], [0], [0], [1], [0, 0, 1, 1], [], []>} : vector<32x128xf32>, vector<128x128xf32>, vector<32x128xf32> -> vector<32x128xf32>
    %cst_67 = arith.constant 0x7F800000 : f32
    %129 = vector.broadcast %cst_67 : f32 to vector<32x128xf32>
    %130 = arith.select %36, %128, %129 : vector<32x128xi1>, vector<32x128xf32>
    %131 = vector.shape_cast %130 : vector<32x128xf32> to vector<1x32x128xf32>
    %cst_68 = arith.constant dense<0x7F800000> : vector<1xf32>
    %132 = vector.multi_reduction <minimumf>, %131, %cst_68 [1, 2] : vector<1x32x128xf32> to vector<1xf32>
    %133 = vector.shape_cast %132 : vector<1xf32> to vector<1x1x1xf32>
    %134 = vector.extract %133[0, 0, 0] : f32 from vector<1x1x1xf32>
    %c4_69 = arith.constant 4 : index
    %c0_70 = arith.constant 0 : index
    %135 = memref.load %arg6[%c4_69, %c0_70] : memref<8x2xf32, #tpu.memory_space<smem>>
    memref.store %134, %arg6[%c4_69, %c0_70] : memref<8x2xf32, #tpu.memory_space<smem>>
    %cst_71 = arith.constant 0xFF800000 : f32
    %136 = vector.broadcast %cst_71 : f32 to vector<32x128xf32>
    %137 = arith.select %36, %128, %136 : vector<32x128xi1>, vector<32x128xf32>
    %138 = vector.shape_cast %137 : vector<32x128xf32> to vector<1x32x128xf32>
    %cst_72 = arith.constant dense<0xFF800000> : vector<1xf32>
    %139 = vector.multi_reduction <maximumf>, %138, %cst_72 [1, 2] : vector<1x32x128xf32> to vector<1xf32>
    %140 = vector.shape_cast %139 : vector<1xf32> to vector<1x1x1xf32>
    %141 = vector.extract %140[0, 0, 0] : f32 from vector<1x1x1xf32>
    %c4_73 = arith.constant 4 : index
    %c1_74 = arith.constant 1 : index
    %142 = memref.load %arg6[%c4_73, %c1_74] : memref<8x2xf32, #tpu.memory_space<smem>>
    memref.store %141, %arg6[%c4_73, %c1_74] : memref<8x2xf32, #tpu.memory_space<smem>>
    %143 = vector.extract_strided_slice %128 {offsets = [0, 0], sizes = [16, 16], strides = [1, 1]} : vector<32x128xf32> to vector<16x16xf32>
    %c4_75 = arith.constant 4 : index
    %c0_76 = arith.constant 0 : index
    %c0_77 = arith.constant 0 : index
    %144 = vector.load %arg5[%c4_75, %c0_76, %c0_77] : memref<8x16x16xf32, #tpu.memory_space<vmem>>, vector<1x16x16xf32>
    %145 = vector.shape_cast %144 : vector<1x16x16xf32> to vector<16x16xf32>
    %146 = vector.shape_cast %143 : vector<16x16xf32> to vector<1x16x16xf32>
    tpu.vector_store %arg5[%c4_75, %c0_76, %c0_77], %146 {strides = array<i32>} : memref<8x16x16xf32, #tpu.memory_space<vmem>>, vector<1x16x16xf32>,
    %c5 = arith.constant 5 : index
    %c0_78 = arith.constant 0 : index
    %147 = vector.load %arg0[%c5, %c0_78] : memref<8x128xf32, #tpu.memory_space<vmem>>, vector<1x128xf32>
    %148 = vector.broadcast %147 : vector<1x128xf32> to vector<32x128xf32>
    %149 = arith.mulf %14, %148 : vector<32x128xf32>
    %cst_79 = arith.constant dense<0.000000e+00> : vector<32x128xf32>
    %150 = tpu.matmul %149, %23, %cst_79 {dimension_numbers = #tpu.dot_dimension_numbers<[1], [0], [0], [1], [0, 0, 1, 1], [], []>} : vector<32x128xf32>, vector<128x128xf32>, vector<32x128xf32> -> vector<32x128xf32>
    %cst_80 = arith.constant 0x7F800000 : f32
    %151 = vector.broadcast %cst_80 : f32 to vector<32x128xf32>
    %152 = arith.select %36, %150, %151 : vector<32x128xi1>, vector<32x128xf32>
    %153 = vector.shape_cast %152 : vector<32x128xf32> to vector<1x32x128xf32>
    %cst_81 = arith.constant dense<0x7F800000> : vector<1xf32>
    %154 = vector.multi_reduction <minimumf>, %153, %cst_81 [1, 2] : vector<1x32x128xf32> to vector<1xf32>
    %155 = vector.shape_cast %154 : vector<1xf32> to vector<1x1x1xf32>
    %156 = vector.extract %155[0, 0, 0] : f32 from vector<1x1x1xf32>
    %c5_82 = arith.constant 5 : index
    %c0_83 = arith.constant 0 : index
    %157 = memref.load %arg6[%c5_82, %c0_83] : memref<8x2xf32, #tpu.memory_space<smem>>
    memref.store %156, %arg6[%c5_82, %c0_83] : memref<8x2xf32, #tpu.memory_space<smem>>
    %cst_84 = arith.constant 0xFF800000 : f32
    %158 = vector.broadcast %cst_84 : f32 to vector<32x128xf32>
    %159 = arith.select %36, %150, %158 : vector<32x128xi1>, vector<32x128xf32>
    %160 = vector.shape_cast %159 : vector<32x128xf32> to vector<1x32x128xf32>
    %cst_85 = arith.constant dense<0xFF800000> : vector<1xf32>
    %161 = vector.multi_reduction <maximumf>, %160, %cst_85 [1, 2] : vector<1x32x128xf32> to vector<1xf32>
    %162 = vector.shape_cast %161 : vector<1xf32> to vector<1x1x1xf32>
    %163 = vector.extract %162[0, 0, 0] : f32 from vector<1x1x1xf32>
    %c5_86 = arith.constant 5 : index
    %c1_87 = arith.constant 1 : index
    %164 = memref.load %arg6[%c5_86, %c1_87] : memref<8x2xf32, #tpu.memory_space<smem>>
    memref.store %163, %arg6[%c5_86, %c1_87] : memref<8x2xf32, #tpu.memory_space<smem>>
    %165 = vector.extract_strided_slice %150 {offsets = [0, 0], sizes = [16, 16], strides = [1, 1]} : vector<32x128xf32> to vector<16x16xf32>
    %c5_88 = arith.constant 5 : index
    %c0_89 = arith.constant 0 : index
    %c0_90 = arith.constant 0 : index
    %166 = vector.load %arg5[%c5_88, %c0_89, %c0_90] : memref<8x16x16xf32, #tpu.memory_space<vmem>>, vector<1x16x16xf32>
    %167 = vector.shape_cast %166 : vector<1x16x16xf32> to vector<16x16xf32>
    %168 = vector.shape_cast %165 : vector<16x16xf32> to vector<1x16x16xf32>
    tpu.vector_store %arg5[%c5_88, %c0_89, %c0_90], %168 {strides = array<i32>} : memref<8x16x16xf32, #tpu.memory_space<vmem>>, vector<1x16x16xf32>,
    %c6 = arith.constant 6 : index
    %c0_91 = arith.constant 0 : index
    %169 = vector.load %arg0[%c6, %c0_91] : memref<8x128xf32, #tpu.memory_space<vmem>>, vector<1x128xf32>
    %170 = vector.broadcast %169 : vector<1x128xf32> to vector<32x128xf32>
    %171 = arith.mulf %14, %170 : vector<32x128xf32>
    %cst_92 = arith.constant dense<0.000000e+00> : vector<32x128xf32>
    %172 = tpu.matmul %171, %23, %cst_92 {dimension_numbers = #tpu.dot_dimension_numbers<[1], [0], [0], [1], [0, 0, 1, 1], [], []>} : vector<32x128xf32>, vector<128x128xf32>, vector<32x128xf32> -> vector<32x128xf32>
    %cst_93 = arith.constant 0x7F800000 : f32
    %173 = vector.broadcast %cst_93 : f32 to vector<32x128xf32>
    %174 = arith.select %36, %172, %173 : vector<32x128xi1>, vector<32x128xf32>
    %175 = vector.shape_cast %174 : vector<32x128xf32> to vector<1x32x128xf32>
    %cst_94 = arith.constant dense<0x7F800000> : vector<1xf32>
    %176 = vector.multi_reduction <minimumf>, %175, %cst_94 [1, 2] : vector<1x32x128xf32> to vector<1xf32>
    %177 = vector.shape_cast %176 : vector<1xf32> to vector<1x1x1xf32>
    %178 = vector.extract %177[0, 0, 0] : f32 from vector<1x1x1xf32>
    %c6_95 = arith.constant 6 : index
    %c0_96 = arith.constant 0 : index
    %179 = memref.load %arg6[%c6_95, %c0_96] : memref<8x2xf32, #tpu.memory_space<smem>>
    memref.store %178, %arg6[%c6_95, %c0_96] : memref<8x2xf32, #tpu.memory_space<smem>>
    %cst_97 = arith.constant 0xFF800000 : f32
    %180 = vector.broadcast %cst_97 : f32 to vector<32x128xf32>
    %181 = arith.select %36, %172, %180 : vector<32x128xi1>, vector<32x128xf32>
    %182 = vector.shape_cast %181 : vector<32x128xf32> to vector<1x32x128xf32>
    %cst_98 = arith.constant dense<0xFF800000> : vector<1xf32>
    %183 = vector.multi_reduction <maximumf>, %182, %cst_98 [1, 2] : vector<1x32x128xf32> to vector<1xf32>
    %184 = vector.shape_cast %183 : vector<1xf32> to vector<1x1x1xf32>
    %185 = vector.extract %184[0, 0, 0] : f32 from vector<1x1x1xf32>
    %c6_99 = arith.constant 6 : index
    %c1_100 = arith.constant 1 : index
    %186 = memref.load %arg6[%c6_99, %c1_100] : memref<8x2xf32, #tpu.memory_space<smem>>
    memref.store %185, %arg6[%c6_99, %c1_100] : memref<8x2xf32, #tpu.memory_space<smem>>
    %187 = vector.extract_strided_slice %172 {offsets = [0, 0], sizes = [16, 16], strides = [1, 1]} : vector<32x128xf32> to vector<16x16xf32>
    %c6_101 = arith.constant 6 : index
    %c0_102 = arith.constant 0 : index
    %c0_103 = arith.constant 0 : index
    %188 = vector.load %arg5[%c6_101, %c0_102, %c0_103] : memref<8x16x16xf32, #tpu.memory_space<vmem>>, vector<1x16x16xf32>
    %189 = vector.shape_cast %188 : vector<1x16x16xf32> to vector<16x16xf32>
    %190 = vector.shape_cast %187 : vector<16x16xf32> to vector<1x16x16xf32>
    tpu.vector_store %arg5[%c6_101, %c0_102, %c0_103], %190 {strides = array<i32>} : memref<8x16x16xf32, #tpu.memory_space<vmem>>, vector<1x16x16xf32>,
    %c7 = arith.constant 7 : index
    %c0_104 = arith.constant 0 : index
    %191 = vector.load %arg0[%c7, %c0_104] : memref<8x128xf32, #tpu.memory_space<vmem>>, vector<1x128xf32>
    %192 = vector.broadcast %191 : vector<1x128xf32> to vector<32x128xf32>
    %193 = arith.mulf %14, %192 : vector<32x128xf32>
    %cst_105 = arith.constant dense<0.000000e+00> : vector<32x128xf32>
    %194 = tpu.matmul %193, %23, %cst_105 {dimension_numbers = #tpu.dot_dimension_numbers<[1], [0], [0], [1], [0, 0, 1, 1], [], []>} : vector<32x128xf32>, vector<128x128xf32>, vector<32x128xf32> -> vector<32x128xf32>
    %cst_106 = arith.constant 0x7F800000 : f32
    %195 = vector.broadcast %cst_106 : f32 to vector<32x128xf32>
    %196 = arith.select %36, %194, %195 : vector<32x128xi1>, vector<32x128xf32>
    %197 = vector.shape_cast %196 : vector<32x128xf32> to vector<1x32x128xf32>
    %cst_107 = arith.constant dense<0x7F800000> : vector<1xf32>
    %198 = vector.multi_reduction <minimumf>, %197, %cst_107 [1, 2] : vector<1x32x128xf32> to vector<1xf32>
    %199 = vector.shape_cast %198 : vector<1xf32> to vector<1x1x1xf32>
    %200 = vector.extract %199[0, 0, 0] : f32 from vector<1x1x1xf32>
    %c7_108 = arith.constant 7 : index
    %c0_109 = arith.constant 0 : index
    %201 = memref.load %arg6[%c7_108, %c0_109] : memref<8x2xf32, #tpu.memory_space<smem>>
    memref.store %200, %arg6[%c7_108, %c0_109] : memref<8x2xf32, #tpu.memory_space<smem>>
    %cst_110 = arith.constant 0xFF800000 : f32
    %202 = vector.broadcast %cst_110 : f32 to vector<32x128xf32>
    %203 = arith.select %36, %194, %202 : vector<32x128xi1>, vector<32x128xf32>
    %204 = vector.shape_cast %203 : vector<32x128xf32> to vector<1x32x128xf32>
    %cst_111 = arith.constant dense<0xFF800000> : vector<1xf32>
    %205 = vector.multi_reduction <maximumf>, %204, %cst_111 [1, 2] : vector<1x32x128xf32> to vector<1xf32>
    %206 = vector.shape_cast %205 : vector<1xf32> to vector<1x1x1xf32>
    %207 = vector.extract %206[0, 0, 0] : f32 from vector<1x1x1xf32>
    %c7_112 = arith.constant 7 : index
    %c1_113 = arith.constant 1 : index
    %208 = memref.load %arg6[%c7_112, %c1_113] : memref<8x2xf32, #tpu.memory_space<smem>>
    memref.store %207, %arg6[%c7_112, %c1_113] : memref<8x2xf32, #tpu.memory_space<smem>>
    %209 = vector.extract_strided_slice %194 {offsets = [0, 0], sizes = [16, 16], strides = [1, 1]} : vector<32x128xf32> to vector<16x16xf32>
    %c7_114 = arith.constant 7 : index
    %c0_115 = arith.constant 0 : index
    %c0_116 = arith.constant 0 : index
    %210 = vector.load %arg5[%c7_114, %c0_115, %c0_116] : memref<8x16x16xf32, #tpu.memory_space<vmem>>, vector<1x16x16xf32>
    %211 = vector.shape_cast %210 : vector<1x16x16xf32> to vector<16x16xf32>
    %212 = vector.shape_cast %209 : vector<16x16xf32> to vector<1x16x16xf32>
    tpu.vector_store %arg5[%c7_114, %c0_115, %c0_116], %212 {strides = array<i32>} : memref<8x16x16xf32, #tpu.memory_space<vmem>>, vector<1x16x16xf32>,
    return
  }
}

</mosaic_0001>

<llo_original>
// kernel: tpu_custom_call.1
$region0: #{tpu_custom_call.1}
  #allocation0 [shape = 'u32[]', space=smem, size = 0x4, offset = 0x4, fixed_abs, tag = 'smem constant byte address 0x4 - core index']
  #allocation1 [shape = 'u32[144,128]{1,0:T(1,128)}', space=vmem, size = 0x12000, scoped, tag = 'internal scratch']
  %s0 = inlined_call_operand.vmem [shape: f32[8,128], index: 0, kind: input, shape index: {}]
  %s1 = inlined_call_operand.vmem [shape: s32[2,128], index: 1, kind: input, shape index: {}]
  %s2 = inlined_call_operand.vmem [shape: s32[128,2], index: 2, kind: input, shape index: {}]
  %s3 = inlined_call_operand.vmem [shape: s32[32,1], index: 3, kind: input, shape index: {}]
  %s4 = inlined_call_operand.vmem [shape: s32[1,128], index: 4, kind: input, shape index: {}]
  %s5 = inlined_call_operand.hbm [shape: f32[8,16,16], index: 5, kind: output, shape index: {0}]
  %s6 = inlined_call_operand.vmem [shape: f32[8,2], index: 6, kind: output, shape index: {1}]
  %7 = xla_tuple %s5, %s6
  %s8 = sld [smem:[#allocation0]]
  $region38: #{tpu_custom_call.1} parent=0
    _
  %s10 = ssub.s32 1, %s8
  %s11 = scalar_select 0, %s10, %s8
  $region1: #{tpu_custom_call.1} parent=0
    #allocation2 [shape = 'u8[65536]{0}', space=vmem, size = 0x10000, scoped, tag = 'output window, operand 0, single buffered']
    #allocation3 [shape = 's32[1]{0}', space=sflag, size = 0x4, scoped, tag = 'scoped memory for tpu_custom_call.1']
    #allocation4 [shape = 's32[1]{0}', space=sflag, size = 0x4, scoped, tag = 'scoped memory for tpu_custom_call.1']
    #allocation5 [shape = 'u8[4096]{0}', space=smem, size = 0x1000, scoped, tag = 'output window, operand 1, single buffered']
    %12 = vsyncpa [#allocation3], 0
    %13 = vsyncpa [#allocation4], 0
    // Predicated region
    $region2: #{tpu_custom_call.1} parent=1 // pred_check
      _
    $region3: #{tpu_custom_call.1} parent=1 // pred_check_branch
      %15 = sbr.rel (0) target = $region5
    $region4: #{tpu_custom_call.1} parent=1 // pred_region
      _
    $region5: #{tpu_custom_call.1} parent=1 // pred_fallthru
      _
    // Predicated region
    $region6: #{tpu_custom_call.1} parent=1 // pred_check
      _
    $region7: #{tpu_custom_call.1} parent=1 // pred_check_branch
      %17 = sbr.rel (0) target = $region9
    $region8: #{tpu_custom_call.1} parent=1 // pred_region
      _
    $region9: #{tpu_custom_call.1} parent=1 // pred_fallthru
      _
    // Predicated region
    $region10: #{tpu_custom_call.1} parent=1 // pred_check
      _
    $region11: #{tpu_custom_call.1} parent=1 // pred_check_branch
      %19 = sbr.rel (0) target = $region13
    $region12: #{tpu_custom_call.1} parent=1 // pred_region
      _
    $region13: #{tpu_custom_call.1} parent=1 // pred_fallthru
      _
    // Predicated region
    $region14: #{tpu_custom_call.1} parent=1 // pred_check
      _
    $region15: #{tpu_custom_call.1} parent=1 // pred_check_branch
      %21 = sbr.rel (0) target = $region17
    $region16: #{tpu_custom_call.1} parent=1 // pred_region
      _
    $region17: #{tpu_custom_call.1} parent=1 // pred_fallthru
      _
    // Predicated region
    $region18: #{tpu_custom_call.1} parent=1 // pred_check
      _
    $region19: #{tpu_custom_call.1} parent=1 // pred_check_branch
      %23 = sbr.rel (0) target = $region21
    $region20: #{tpu_custom_call.1} parent=1 // pred_region
      _
    $region21: #{tpu_custom_call.1} parent=1 // pred_fallthru
      _
    %v24 = vld [vmem:[%s3] sm:$0xff]
    %v25 = vld [vmem:[%s3 + $0x8] sm:$0xff]
    %v26 = vld [vmem:[%s3 + $0x10] sm:$0xff]
    %v27 = vld [vmem:[%s3 + $0x18] sm:$0xff]
    %v28 = vld [vmem:[%s4] sm:$0x1]
    %v29 = vld [vmem:[%s1] sm:$0x1]
    %v30 = vld [vmem:[%s1 + $0x1] sm:$0x1]
    %v31 = vld [vmem:[%s2] sm:$0xff]
    %v32 = vld [vmem:[%s2 + $0x8] sm:$0xff]
    %v33 = vld [vmem:[%s2 + $0x10] sm:$0xff]
    %v34 = vld [vmem:[%s2 + $0x18] sm:$0xff]
    %v35 = vld [vmem:[%s2 + $0x20] sm:$0xff]
    %v36 = vld [vmem:[%s2 + $0x28] sm:$0xff]
    %v37 = vld [vmem:[%s2 + $0x30] sm:$0xff]
    %v38 = vld [vmem:[%s2 + $0x38] sm:$0xff]
    %v39 = vld [vmem:[%s2 + $0x40] sm:$0xff]
    %v40 = vld [vmem:[%s2 + $0x48] sm:$0xff]
    %v41 = vld [vmem:[%s2 + $0x50] sm:$0xff]
    %v42 = vld [vmem:[%s2 + $0x58] sm:$0xff]
    %v43 = vld [vmem:[%s2 + $0x60] sm:$0xff]
    %v44 = vld [vmem:[%s2 + $0x68] sm:$0xff]
    %v45 = vld [vmem:[%s2 + $0x70] sm:$0xff]
    %v46 = vld [vmem:[%s2 + $0x78] sm:$0xff]
    %v47 = vlaneseq
    %v48 = vshrl.u32 %v47, 7
    %v49 = vsub.s32 0, %v48
    %v50 = vrot.slane %v29, %v49
    %51 = vset.pattern.permute.xlu0 0
    %52 = vperm.xlu0 %51, %v24
    %v53 = vpop.permute.xlu0 %52
    %54 = vset.pattern.permute.xlu0 0
    %55 = vperm.xlu0 %54, %v25
    %v56 = vpop.permute.xlu0 %55
    %57 = vset.pattern.permute.xlu0 0
    %58 = vperm.xlu0 %57, %v26
    %v59 = vpop.permute.xlu0 %58
    %60 = vset.pattern.permute.xlu0 0
    %61 = vperm.xlu0 %60, %v27
    %v62 = vpop.permute.xlu0 %61
    %vm63 = vcmp.le.s32.totalorder %v50, %v53
    %vm64 = vcmp.le.s32.totalorder %v50, %v56
    %vm65 = vcmp.le.s32.totalorder %v50, %v59
    %vm66 = vcmp.le.s32.totalorder %v50, %v62
    %v67 = vlaneseq
    %v68 = vshrl.u32 %v67, 7
    %v69 = vsub.s32 0, %v68
    %v70 = vrot.slane %v30, %v69
    %vm71 = vcmp.lt.s32.totalorder %v53, %v70
    %vm72 = vcmp.lt.s32.totalorder %v56, %v70
    %vm73 = vcmp.lt.s32.totalorder %v59, %v70
    %vm74 = vcmp.lt.s32.totalorder %v62, %v70
    %vm75 = vmand %vm63, %vm71
    %vm76 = vmand %vm64, %vm72
    %vm77 = vmand %vm65, %vm73
    %vm78 = vmand %vm66, %vm74
    %v79 = vsel %vm75, 1, 0
    %v80 = vsel %vm76, 1, 0
    %v81 = vsel %vm77, 1, 0
    %v82 = vsel %vm78, 1, 0
    %v83 = vcvt.s32.f32 %v79
    %v84 = vcvt.s32.f32 %v80
    %v85 = vcvt.s32.f32 %v81
    %v86 = vcvt.s32.f32 %v82
    %87 = vset.pattern.permute.xlu0 0
    %88 = vperm.xlu0 %87, %v31
    %v89 = vpop.permute.xlu0 %88
    %90 = vset.pattern.permute.xlu0 0
    %91 = vperm.xlu0 %90, %v32
    %v92 = vpop.permute.xlu0 %91
    %93 = vset.pattern.permute.xlu0 0
    %94 = vperm.xlu0 %93, %v33
    %v95 = vpop.permute.xlu0 %94
    %96 = vset.pattern.permute.xlu0 0
    %97 = vperm.xlu0 %96, %v34
    %v98 = vpop.permute.xlu0 %97
    %99 = vset.pattern.permute.xlu0 0
    %100 = vperm.xlu0 %99, %v35
    %v101 = vpop.permute.xlu0 %100
    %102 = vset.pattern.permute.xlu0 0
    %103 = vperm.xlu0 %102, %v36
    %v104 = vpop.permute.xlu0 %103
    %105 = vset.pattern.permute.xlu0 0
    %106 = vperm.xlu0 %105, %v37
    %v107 = vpop.permute.xlu0 %106
    %108 = vset.pattern.permute.xlu0 0
    %109 = vperm.xlu0 %108, %v38
    %v110 = vpop.permute.xlu0 %109
    %111 = vset.pattern.permute.xlu0 0
    %112 = vperm.xlu0 %111, %v39
    %v113 = vpop.permute.xlu0 %112
    %114 = vset.pattern.permute.xlu0 0
    %115 = vperm.xlu0 %114, %v40
    %v116 = vpop.permute.xlu0 %115
    %117 = vset.pattern.permute.xlu0 0
    %118 = vperm.xlu0 %117, %v41
    %v119 = vpop.permute.xlu0 %118
    %120 = vset.pattern.permute.xlu0 0
    %121 = vperm.xlu0 %120, %v42
    %v122 = vpop.permute.xlu0 %121
    %123 = vset.pattern.permute.xlu0 0
    %124 = vperm.xlu0 %123, %v43
    %v125 = vpop.permute.xlu0 %124
    %126 = vset.pattern.permute.xlu0 0
    %127 = vperm.xlu0 %126, %v44
    %v128 = vpop.permute.xlu0 %127
    %129 = vset.pattern.permute.xlu0 0
    %130 = vperm.xlu0 %129, %v45
    %v131 = vpop.permute.xlu0 %130
    %132 = vset.pattern.permute.xlu0 0
    %133 = vperm.xlu0 %132, %v46
    %v134 = vpop.permute.xlu0 %133
    %v135 = vlaneseq
    %v136 = vshrl.u32 %v135, 7
    %v137 = vsub.s32 0, %v136
    %v138 = vrot.slane %v28, %v137
    %vm139 = vcmp.le.s32.totalorder %v89, %v138
    %vm140 = vcmp.le.s32.totalorder %v92, %v138
    %vm141 = vcmp.le.s32.totalorder %v95, %v138
    %vm142 = vcmp.le.s32.totalorder %v98, %v138
    %vm143 = vcmp.le.s32.totalorder %v101, %v138
    %vm144 = vcmp.le.s32.totalorder %v104, %v138
    %vm145 = vcmp.le.s32.totalorder %v107, %v138
    %vm146 = vcmp.le.s32.totalorder %v110, %v138
    %vm147 = vcmp.le.s32.totalorder %v113, %v138
    %vm148 = vcmp.le.s32.totalorder %v116, %v138
    %vm149 = vcmp.le.s32.totalorder %v119, %v138
    %vm150 = vcmp.le.s32.totalorder %v122, %v138
    %vm151 = vcmp.le.s32.totalorder %v125, %v138
    %vm152 = vcmp.le.s32.totalorder %v128, %v138
    %vm153 = vcmp.le.s32.totalorder %v131, %v138
    %vm154 = vcmp.le.s32.totalorder %v134, %v138
    %155 = vset.pattern.permute.xlu0 1
    %156 = vperm.xlu0 %155, %v31
    %v157 = vpop.permute.xlu0 %156
    %158 = vset.pattern.permute.xlu0 1
    %159 = vperm.xlu0 %158, %v32
    %v160 = vpop.permute.xlu0 %159
    %161 = vset.pattern.permute.xlu0 1
    %162 = vperm.xlu0 %161, %v33
    %v163 = vpop.permute.xlu0 %162
    %164 = vset.pattern.permute.xlu0 1
    %165 = vperm.xlu0 %164, %v34
    %v166 = vpop.permute.xlu0 %165
    %167 = vset.pattern.permute.xlu0 1
    %168 = vperm.xlu0 %167, %v35
    %v169 = vpop.permute.xlu0 %168
    %170 = vset.pattern.permute.xlu0 1
    %171 = vperm.xlu0 %170, %v36
    %v172 = vpop.permute.xlu0 %171
    %173 = vset.pattern.permute.xlu0 1
    %174 = vperm.xlu0 %173, %v37
    %v175 = vpop.permute.xlu0 %174
    %176 = vset.pattern.permute.xlu0 1
    %177 = vperm.xlu0 %176, %v38
    %v178 = vpop.permute.xlu0 %177
    %179 = vset.pattern.permute.xlu0 1
    %180 = vperm.xlu0 %179, %v39
    %v181 = vpop.permute.xlu0 %180
    %182 = vset.pattern.permute.xlu0 1
    %183 = vperm.xlu0 %182, %v40
    %v184 = vpop.permute.xlu0 %183
    %185 = vset.pattern.permute.xlu0 1
    %186 = vperm.xlu0 %185, %v41
    %v187 = vpop.permute.xlu0 %186
    %188 = vset.pattern.permute.xlu0 1
    %189 = vperm.xlu0 %188, %v42
    %v190 = vpop.permute.xlu0 %189
    %191 = vset.pattern.permute.xlu0 1
    %192 = vperm.xlu0 %191, %v43
    %v193 = vpop.permute.xlu0 %192
    %194 = vset.pattern.permute.xlu0 1
    %195 = vperm.xlu0 %194, %v44
    %v196 = vpop.permute.xlu0 %195
    %197 = vset.pattern.permute.xlu0 1
    %198 = vperm.xlu0 %197, %v45
    %v199 = vpop.permute.xlu0 %198
    %200 = vset.pattern.permute.xlu0 1
    %201 = vperm.xlu0 %200, %v46
    %v202 = vpop.permute.xlu0 %201
    %vm203 = vcmp.lt.s32.totalorder %v138, %v157
    %vm204 = vcmp.lt.s32.totalorder %v138, %v160
    %vm205 = vcmp.lt.s32.totalorder %v138, %v163
    %vm206 = vcmp.lt.s32.totalorder %v138, %v166
    %vm207 = vcmp.lt.s32.totalorder %v138, %v169
    %vm208 = vcmp.lt.s32.totalorder %v138, %v172
    %vm209 = vcmp.lt.s32.totalorder %v138, %v175
    %vm210 = vcmp.lt.s32.totalorder %v138, %v178
    %vm211 = vcmp.lt.s32.totalorder %v138, %v181
    %vm212 = vcmp.lt.s32.totalorder %v138, %v184
    %vm213 = vcmp.lt.s32.totalorder %v138, %v187
    %vm214 = vcmp.lt.s32.totalorder %v138, %v190
    %vm215 = vcmp.lt.s32.totalorder %v138, %v193
    %vm216 = vcmp.lt.s32.totalorder %v138, %v196
    %vm217 = vcmp.lt.s32.totalorder %v138, %v199
    %vm218 = vcmp.lt.s32.totalorder %v138, %v202
    %vm219 = vmand %vm139, %vm203
    %vm220 = vmand %vm140, %vm204
    %vm221 = vmand %vm141, %vm205
    %vm222 = vmand %vm142, %vm206
    %vm223 = vmand %vm143, %vm207
    %vm224 = vmand %vm144, %vm208
    %vm225 = vmand %vm145, %vm209
    %vm226 = vmand %vm146, %vm210
    %vm227 = vmand %vm147, %vm211
    %vm228 = vmand %vm148, %vm212
    %vm229 = vmand %vm149, %vm213
    %vm230 = vmand %vm150, %vm214
    %vm231 = vmand %vm151, %vm215
    %vm232 = vmand %vm152, %vm216
    %vm233 = vmand %vm153, %vm217
    %vm234 = vmand %vm154, %vm218
    %v235 = vsel %vm219, 1, 0
    %v236 = vsel %vm220, 1, 0
    %v237 = vsel %vm221, 1, 0
    %v238 = vsel %vm222, 1, 0
    %v239 = vsel %vm223, 1, 0
    %v240 = vsel %vm224, 1, 0
    %v241 = vsel %vm225, 1, 0
    %v242 = vsel %vm226, 1, 0
    %v243 = vsel %vm227, 1, 0
    %v244 = vsel %vm228, 1, 0
    %v245 = vsel %vm229, 1, 0
    %v246 = vsel %vm230, 1, 0
    %v247 = vsel %vm231, 1, 0
    %v248 = vsel %vm232, 1, 0
    %v249 = vsel %vm233, 1, 0
    %v250 = vsel %vm234, 1, 0
    %v251 = vcvt.s32.f32 %v235
    %v252 = vcvt.s32.f32 %v236
    %v253 = vcvt.s32.f32 %v237
    %v254 = vcvt.s32.f32 %v238
    %v255 = vcvt.s32.f32 %v239
    %v256 = vcvt.s32.f32 %v240
    %v257 = vcvt.s32.f32 %v241
    %v258 = vcvt.s32.f32 %v242
    %v259 = vcvt.s32.f32 %v243
    %v260 = vcvt.s32.f32 %v244
    %v261 = vcvt.s32.f32 %v245
    %v262 = vcvt.s32.f32 %v246
    %v263 = vcvt.s32.f32 %v247
    %v264 = vcvt.s32.f32 %v248
    %v265 = vcvt.s32.f32 %v249
    %v266 = vcvt.s32.f32 %v250
    %vm267 = vcmp.ge.s32.totalorder %v24, 0
    %vm268 = vcmp.ge.s32.totalorder %v25, 0
    %vm269 = vcmp.ge.s32.totalorder %v26, 0
    %vm270 = vcmp.ge.s32.totalorder %v27, 0
    %vm271 = vcmp.lt.s32.totalorder %v24, 32
    %vm272 = vcmp.lt.s32.totalorder %v25, 32
    %vm273 = vcmp.lt.s32.totalorder %v26, 32
    %vm274 = vcmp.lt.s32.totalorder %v27, 32
    %vm275 = vmand %vm267, %vm271
    %vm276 = vmand %vm268, %vm272
    %vm277 = vmand %vm269, %vm273
    %vm278 = vmand %vm270, %vm274
    %vm279 = vcmp.ge.s32.totalorder %v28, 0
    %vm280 = vcmp.lt.s32.totalorder %v28, 32
    %vm281 = vmand %vm279, %vm280
    %v282 = vsel %vm275, 1, 0
    %v283 = vsel %vm276, 1, 0
    %v284 = vsel %vm277, 1, 0
    %v285 = vsel %vm278, 1, 0
    %286 = vset.pattern.permute.xlu0 0
    %287 = vperm.xlu0 %286, %v282
    %v288 = vpop.permute.xlu0 %287
    %289 = vset.pattern.permute.xlu0 0
    %290 = vperm.xlu0 %289, %v283
    %v291 = vpop.permute.xlu0 %290
    %292 = vset.pattern.permute.xlu0 0
    %293 = vperm.xlu0 %292, %v284
    %v294 = vpop.permute.xlu0 %293
    %295 = vset.pattern.permute.xlu0 0
    %296 = vperm.xlu0 %295, %v285
    %v297 = vpop.permute.xlu0 %296
    %vm298 = vcmp.eq.s32.totalorder %v288, 1
    %vm299 = vcmp.eq.s32.totalorder %v291, 1
    %vm300 = vcmp.eq.s32.totalorder %v294, 1
    %vm301 = vcmp.eq.s32.totalorder %v297, 1
    %v302 = vsel %vm281, 1, 0
    %v303 = vlaneseq
    %v304 = vshrl.u32 %v303, 7
    %v305 = vsub.s32 0, %v304
    %v306 = vrot.slane %v302, %v305
    %vm307 = vcmp.eq.s32.totalorder %v306, 1
    %vm308 = vmand %vm298, %vm307
    %vm309 = vmand %vm299, %vm307
    %vm310 = vmand %vm300, %vm307
    %vm311 = vmand %vm301, %vm307
    %v312 = vld [vmem:[%s0] sm:$0x1]
    %v313 = vlaneseq
    %v314 = vshrl.u32 %v313, 7
    %v315 = vsub.s32 0, %v314
    %v316 = vrot.slane %v312, %v315
    %v317 = vmul.f32 %v83, %v316
    %v318 = vmul.f32 %v84, %v316
    %v319 = vmul.f32 %v85, %v316
    %v320 = vmul.f32 %v86, %v316
    %321 = vmatprep.subr.mxu0 0.0
    %322 = vmatpush1.msra.mxu0 %v266
    %323 = vmatprep.subr.mxu0 0.0
    %324 = vmatpush1.msra.mxu0 %v265
    %325 = vmatprep.subr.mxu0 0.0
    %326 = vmatpush1.msra.mxu0 %v264
    %327 = vmatprep.subr.mxu0 0.0
    %328 = vmatpush1.msra.mxu0 %v263
    %329 = vmatprep.subr.mxu0 0.0
    %330 = vmatpush1.msra.mxu0 %v262
    %331 = vmatprep.subr.mxu0 0.0
    %332 = vmatpush1.msra.mxu0 %v261
    %333 = vmatprep.subr.mxu0 0.0
    %334 = vmatpush1.msra.mxu0 %v260
    %335 = vmatprep.subr.mxu0 0.0
    %336 = vmatpush1.msra.mxu0 %v259
    %337 = vmatprep.subr.mxu0 0.0
    %338 = vmatpush1.msra.mxu0 %v258
    %339 = vmatprep.subr.mxu0 0.0
    %340 = vmatpush1.msra.mxu0 %v257
    %341 = vmatprep.subr.mxu0 0.0
    %342 = vmatpush1.msra.mxu0 %v256
    %343 = vmatprep.subr.mxu0 0.0
    %344 = vmatpush1.msra.mxu0 %v255
    %345 = vmatprep.subr.mxu0 0.0
    %346 = vmatpush1.msra.mxu0 %v254
    %347 = vmatprep.subr.mxu0 0.0
    %348 = vmatpush1.msra.mxu0 %v253
    %349 = vmatprep.subr.mxu0 0.0
    %350 = vmatpush1.msra.mxu0 %v252
    %351 = vmatprep.subr.mxu0 0.0
    %352 = vmatpush1.msra.mxu0 %v251
    %353 = vmatprep.subr.mxu0 0.0
    %354 = vmatpush2.msra.mxu0 0.0
    %355 = vmatprep.subr.mxu0 0.0
    %356 = vmatpush2.msra.mxu0 0.0
    %357 = vmatprep.subr.mxu0 0.0
    %358 = vmatpush2.msra.mxu0 0.0
    %359 = vmatprep.subr.mxu0 0.0
    %360 = vmatpush2.msra.mxu0 0.0
    %361 = vmatprep.subr.mxu0 0.0
    %362 = vmatpush2.msra.mxu0 0.0
    %363 = vmatprep.subr.mxu0 0.0
    %364 = vmatpush2.msra.mxu0 0.0
    %365 = vmatprep.subr.mxu0 0.0
    %366 = vmatpush2.msra.mxu0 0.0
    %367 = vmatprep.subr.mxu0 0.0
    %368 = vmatpush2.msra.mxu0 0.0
    %369 = vmatprep.subr.mxu0 0.0
    %370 = vmatpush2.msra.mxu0 0.0
    %371 = vmatprep.subr.mxu0 0.0
    %372 = vmatpush2.msra.mxu0 0.0
    %373 = vmatprep.subr.mxu0 0.0
    %374 = vmatpush2.msra.mxu0 0.0
    %375 = vmatprep.subr.mxu0 0.0
    %376 = vmatpush2.msra.mxu0 0.0
    %377 = vmatprep.subr.mxu0 0.0
    %378 = vmatpush2.msra.mxu0 0.0
    %379 = vmatprep.subr.mxu0 0.0
    %380 = vmatpush2.msra.mxu0 0.0
    %381 = vmatprep.subr.mxu0 0.0
    %382 = vmatpush2.msra.mxu0 0.0
    %383 = vmatprep.subr.mxu0 0.0
    %384 = vmatpush2.msra.mxu0 0.0
    %385 = vmatprep.mubr.f32.mxu0 0.0
    %386 = vmatmul.mubr.f32.gmra.mxu0 %v317
    %v387 = vpop.f32.mrf.mxu0
    %v388 = vadd.f32 0.0, %v387
    %v389 = vpop.f32.mrf.mxu0
    %390 = vmatprep.mubr.f32.mxu0 0.0
    %391 = vmatmul.mubr.f32.gmra.mxu0 %v318
    %v392 = vpop.f32.mrf.mxu0
    %v393 = vadd.f32 0.0, %v392
    %v394 = vpop.f32.mrf.mxu0
    %395 = vmatprep.mubr.f32.mxu0 0.0
    %396 = vmatmul.mubr.f32.gmra.mxu0 %v319
    %v397 = vpop.f32.mrf.mxu0
    %v398 = vadd.f32 0.0, %v397
    %v399 = vpop.f32.mrf.mxu0
    %400 = vmatprep.mubr.f32.mxu0 0.0
    %401 = vmatmul.mubr.f32.gmra.mxu0 %v320
    %v402 = vpop.f32.mrf.mxu0
    %v403 = vadd.f32 0.0, %v402
    %v404 = vpop.f32.mrf.mxu0
    %405 = vdwg.mxu0
    %v406 = vsel %vm308, %v388, inf
    %v407 = vsel %vm309, %v393, inf
    %v408 = vsel %vm310, %v398, inf
    %v409 = vsel %vm311, %v403, inf
    %v410 = vmin.f32 %v406, %v407
    %v411 = vmin.f32 %v408, %v409
    %v412 = vmin.f32 %v410, %v411
    %413 = vmin.xlane.f32.xlu0 %v412
    %v414 = vpop.xlane.xlu0 %413
    %v415 = vrot.slane %v414, 4
    %v416 = vmin.f32 %v414, %v415
    %v417 = vrot.slane %v416, 2
    %v418 = vmin.f32 %v416, %v417
    %v419 = vrot.slane %v418, 1
    %v420 = vmin.f32 %v418, %v419
    %s421 = vtos %v420
    %s422 = scalar_lea.smem [#allocation5], 0
    %423 = sst [smem:[%s422]] %s421
    %v424 = vsel %vm308, %v388, -inf
    %v425 = vsel %vm309, %v393, -inf
    %v426 = vsel %vm310, %v398, -inf
    %v427 = vsel %vm311, %v403, -inf
    %v428 = vmax.f32 %v424, %v425
    %v429 = vmax.f32 %v426, %v427
    %v430 = vmax.f32 %v428, %v429
    %431 = vmax.xlane.f32.xlu0 %v430
    %v432 = vpop.xlane.xlu0 %431
    %v433 = vrot.slane %v432, 4
    %v434 = vmax.f32 %v432, %v433
    %v435 = vrot.slane %v434, 2
    %v436 = vmax.f32 %v434, %v435
    %v437 = vrot.slane %v436, 1
    %v438 = vmax.f32 %v436, %v437
    %s439 = vtos %v438
    %s440 = scalar_lea.smem [#allocation5], 1
    %441 = sst [smem:[%s440]] %s439
    %vm442 = vcmask 130048
    %443 = vst.msk [vmem:[#allocation2] sm:$0xff] %vm442, %v388
    %444 = vst.msk [vmem:[#allocation2 + $0x8] sm:$0xff] %vm442, %v393
    %v445 = vld [vmem:[%s0 + $0x1] sm:$0x1]
    %v446 = vlaneseq
    %v447 = vshrl.u32 %v446, 7
    %v448 = vsub.s32 0, %v447
    %v449 = vrot.slane %v445, %v448
    %v450 = vmul.f32 %v83, %v449
    %v451 = vmul.f32 %v84, %v449
    %v452 = vmul.f32 %v85, %v449
    %v453 = vmul.f32 %v86, %v449
    %454 = vmatprep.subr.mxu0 0.0
    %455 = vmatpush1.msra.mxu0 %v266
    %456 = vmatprep.subr.mxu0 0.0
    %457 = vmatpush1.msra.mxu0 %v265
    %458 = vmatprep.subr.mxu0 0.0
    %459 = vmatpush1.msra.mxu0 %v264
    %460 = vmatprep.subr.mxu0 0.0
    %461 = vmatpush1.msra.mxu0 %v263
    %462 = vmatprep.subr.mxu0 0.0
    %463 = vmatpush1.msra.mxu0 %v262
    %464 = vmatprep.subr.mxu0 0.0
    %465 = vmatpush1.msra.mxu0 %v261
    %466 = vmatprep.subr.mxu0 0.0
    %467 = vmatpush1.msra.mxu0 %v260
    %468 = vmatprep.subr.mxu0 0.0
    %469 = vmatpush1.msra.mxu0 %v259
    %470 = vmatprep.subr.mxu0 0.0
    %471 = vmatpush1.msra.mxu0 %v258
    %472 = vmatprep.subr.mxu0 0.0
    %473 = vmatpush1.msra.mxu0 %v257
    %474 = vmatprep.subr.mxu0 0.0
    %475 = vmatpush1.msra.mxu0 %v256
    %476 = vmatprep.subr.mxu0 0.0
    %477 = vmatpush1.msra.mxu0 %v255
    %478 = vmatprep.subr.mxu0 0.0
    %479 = vmatpush1.msra.mxu0 %v254
    %480 = vmatprep.subr.mxu0 0.0
    %481 = vmatpush1.msra.mxu0 %v253
    %482 = vmatprep.subr.mxu0 0.0
    %483 = vmatpush1.msra.mxu0 %v252
    %484 = vmatprep.subr.mxu0 0.0
    %485 = vmatpush1.msra.mxu0 %v251
    %486 = vmatprep.subr.mxu0 0.0
    %487 = vmatpush2.msra.mxu0 0.0
    %488 = vmatprep.subr.mxu0 0.0
    %489 = vmatpush2.msra.mxu0 0.0
    %490 = vmatprep.subr.mxu0 0.0
    %491 = vmatpush2.msra.mxu0 0.0
    %492 = vmatprep.subr.mxu0 0.0
    %493 = vmatpush2.msra.mxu0 0.0
    %494 = vmatprep.subr.mxu0 0.0
    %495 = vmatpush2.msra.mxu0 0.0
    %496 = vmatprep.subr.mxu0 0.0
    %497 = vmatpush2.msra.mxu0 0.0
    %498 = vmatprep.subr.mxu0 0.0
    %499 = vmatpush2.msra.mxu0 0.0
    %500 = vmatprep.subr.mxu0 0.0
    %501 = vmatpush2.msra.mxu0 0.0
    %502 = vmatprep.subr.mxu0 0.0
    %503 = vmatpush2.msra.mxu0 0.0
    %504 = vmatprep.subr.mxu0 0.0
    %505 = vmatpush2.msra.mxu0 0.0
    %506 = vmatprep.subr.mxu0 0.0
    %507 = vmatpush2.msra.mxu0 0.0
    %508 = vmatprep.subr.mxu0 0.0
    %509 = vmatpush2.msra.mxu0 0.0
    %510 = vmatprep.subr.mxu0 0.0
    %511 = vmatpush2.msra.mxu0 0.0
    %512 = vmatprep.subr.mxu0 0.0
    %513 = vmatpush2.msra.mxu0 0.0
    %514 = vmatprep.subr.mxu0 0.0
    %515 = vmatpush2.msra.mxu0 0.0
    %516 = vmatprep.subr.mxu0 0.0
    %517 = vmatpush2.msra.mxu0 0.0
    %518 = vmatprep.mubr.f32.mxu0 0.0
    %519 = vmatmul.mubr.f32.gmra.mxu0 %v450
    %v520 = vpop.f32.mrf.mxu0
    %v521 = vadd.f32 0.0, %v520
    %v522 = vpop.f32.mrf.mxu0
    %523 = vmatprep.mubr.f32.mxu0 0.0
    %524 = vmatmul.mubr.f32.gmra.mxu0 %v451
    %v525 = vpop.f32.mrf.mxu0
    %v526 = vadd.f32 0.0, %v525
    %v527 = vpop.f32.mrf.mxu0
    %528 = vmatprep.mubr.f32.mxu0 0.0
    %529 = vmatmul.mubr.f32.gmra.mxu0 %v452
    %v530 = vpop.f32.mrf.mxu0
    %v531 = vadd.f32 0.0, %v530
    %v532 = vpop.f32.mrf.mxu0
    %533 = vmatprep.mubr.f32.mxu0 0.0
    %534 = vmatmul.mubr.f32.gmra.mxu0 %v453
    %v535 = vpop.f32.mrf.mxu0
    %v536 = vadd.f32 0.0, %v535
    %v537 = vpop.f32.mrf.mxu0
    %538 = vdwg.mxu0
    %v539 = vsel %vm308, %v521, inf
    %v540 = vsel %vm309, %v526, inf
    %v541 = vsel %vm310, %v531, inf
    %v542 = vsel %vm311, %v536, inf
    %v543 = vmin.f32 %v539, %v540
    %v544 = vmin.f32 %v541, %v542
    %v545 = vmin.f32 %v543, %v544
    %546 = vmin.xlane.f32.xlu0 %v545
    %v547 = vpop.xlane.xlu0 %546
    %v548 = vrot.slane %v547, 4
    %v549 = vmin.f32 %v547, %v548
    %v550 = vrot.slane %v549, 2
    %v551 = vmin.f32 %v549, %v550
    %v552 = vrot.slane %v551, 1
    %v553 = vmin.f32 %v551, %v552
    %s554 = vtos %v553
    %s555 = scalar_lea.smem [#allocation5], 128
    %556 = sst [smem:[%s555]] %s554
    %v557 = vsel %vm308, %v521, -inf
    %v558 = vsel %vm309, %v526, -inf
    %v559 = vsel %vm310, %v531, -inf
    %v560 = vsel %vm311, %v536, -inf
    %v561 = vmax.f32 %v557, %v558
    %v562 = vmax.f32 %v559, %v560
    %v563 = vmax.f32 %v561, %v562
    %564 = vmax.xlane.f32.xlu0 %v563
    %v565 = vpop.xlane.xlu0 %564
    %v566 = vrot.slane %v565, 4
    %v567 = vmax.f32 %v565, %v566
    %v568 = vrot.slane %v567, 2
    %v569 = vmax.f32 %v567, %v568
    %v570 = vrot.slane %v569, 1
    %v571 = vmax.f32 %v569, %v570
    %s572 = vtos %v571
    %s573 = scalar_lea.smem [#allocation5], 129
    %574 = sst [smem:[%s573]] %s572
    %s575 = scalar_lea.vmem [#allocation2], 16
    %576 = vst.msk [vmem:[%s575] sm:$0xff] %vm442, %v521
    %577 = vst.msk [vmem:[%s575 + $0x8] sm:$0xff] %vm442, %v526
    %v578 = vld [vmem:[%s0 + $0x2] sm:$0x1]
    %v579 = vlaneseq
    %v580 = vshrl.u32 %v579, 7
    %v581 = vsub.s32 0, %v580
    %v582 = vrot.slane %v578, %v581
    %v583 = vmul.f32 %v83, %v582
    %v584 = vmul.f32 %v84, %v582
    %v585 = vmul.f32 %v85, %v582
    %v586 = vmul.f32 %v86, %v582
    %587 = vmatprep.subr.mxu0 0.0
    %588 = vmatpush1.msra.mxu0 %v266
    %589 = vmatprep.subr.mxu0 0.0
    %590 = vmatpush1.msra.mxu0 %v265
    %591 = vmatprep.subr.mxu0 0.0
    %592 = vmatpush1.msra.mxu0 %v264
    %593 = vmatprep.subr.mxu0 0.0
    %594 = vmatpush1.msra.mxu0 %v263
    %595 = vmatprep.subr.mxu0 0.0
    %596 = vmatpush1.msra.mxu0 %v262
    %597 = vmatprep.subr.mxu0 0.0
    %598 = vmatpush1.msra.mxu0 %v261
    %599 = vmatprep.subr.mxu0 0.0
    %600 = vmatpush1.msra.mxu0 %v260
    %601 = vmatprep.subr.mxu0 0.0
    %602 = vmatpush1.msra.mxu0 %v259
    %603 = vmatprep.subr.mxu0 0.0
    %604 = vmatpush1.msra.mxu0 %v258
    %605 = vmatprep.subr.mxu0 0.0
    %606 = vmatpush1.msra.mxu0 %v257
    %607 = vmatprep.subr.mxu0 0.0
    %608 = vmatpush1.msra.mxu0 %v256
    %609 = vmatprep.subr.mxu0 0.0
    %610 = vmatpush1.msra.mxu0 %v255
    %611 = vmatprep.subr.mxu0 0.0
    %612 = vmatpush1.msra.mxu0 %v254
    %613 = vmatprep.subr.mxu0 0.0
    %614 = vmatpush1.msra.mxu0 %v253
    %615 = vmatprep.subr.mxu0 0.0
    %616 = vmatpush1.msra.mxu0 %v252
    %617 = vmatprep.subr.mxu0 0.0
    %618 = vmatpush1.msra.mxu0 %v251
    %619 = vmatprep.subr.mxu0 0.0
    %620 = vmatpush2.msra.mxu0 0.0
    %621 = vmatprep.subr.mxu0 0.0
    %622 = vmatpush2.msra.mxu0 0.0
    %623 = vmatprep.subr.mxu0 0.0
    %624 = vmatpush2.msra.mxu0 0.0
    %625 = vmatprep.subr.mxu0 0.0
    %626 = vmatpush2.msra.mxu0 0.0
    %627 = vmatprep.subr.mxu0 0.0
    %628 = vmatpush2.msra.mxu0 0.0
    %629 = vmatprep.subr.mxu0 0.0
    %630 = vmatpush2.msra.mxu0 0.0
    %631 = vmatprep.subr.mxu0 0.0
    %632 = vmatpush2.msra.mxu0 0.0
    %633 = vmatprep.subr.mxu0 0.0
    %634 = vmatpush2.msra.mxu0 0.0
    %635 = vmatprep.subr.mxu0 0.0
    %636 = vmatpush2.msra.mxu0 0.0
    %637 = vmatprep.subr.mxu0 0.0
    %638 = vmatpush2.msra.mxu0 0.0
    %639 = vmatprep.subr.mxu0 0.0
    %640 = vmatpush2.msra.mxu0 0.0
    %641 = vmatprep.subr.mxu0 0.0
    %642 = vmatpush2.msra.mxu0 0.0
    %643 = vmatprep.subr.mxu0 0.0
    %644 = vmatpush2.msra.mxu0 0.0
    %645 = vmatprep.subr.mxu0 0.0
    %646 = vmatpush2.msra.mxu0 0.0
    %647 = vmatprep.subr.mxu0 0.0
    %648 = vmatpush2.msra.mxu0 0.0
    %649 = vmatprep.subr.mxu0 0.0
    %650 = vmatpush2.msra.mxu0 0.0
    %651 = vmatprep.mubr.f32.mxu0 0.0
    %652 = vmatmul.mubr.f32.gmra.mxu0 %v583
    %v653 = vpop.f32.mrf.mxu0
    %v654 = vadd.f32 0.0, %v653
    %v655 = vpop.f32.mrf.mxu0
    %656 = vmatprep.mubr.f32.mxu0 0.0
    %657 = vmatmul.mubr.f32.gmra.mxu0 %v584
    %v658 = vpop.f32.mrf.mxu0
    %v659 = vadd.f32 0.0, %v658
    %v660 = vpop.f32.mrf.mxu0
    %661 = vmatprep.mubr.f32.mxu0 0.0
    %662 = vmatmul.mubr.f32.gmra.mxu0 %v585
    %v663 = vpop.f32.mrf.mxu0
    %v664 = vadd.f32 0.0, %v663
    %v665 = vpop.f32.mrf.mxu0
    %666 = vmatprep.mubr.f32.mxu0 0.0
    %667 = vmatmul.mubr.f32.gmra.mxu0 %v586
    %v668 = vpop.f32.mrf.mxu0
    %v669 = vadd.f32 0.0, %v668
    %v670 = vpop.f32.mrf.mxu0
    %671 = vdwg.mxu0
    %v672 = vsel %vm308, %v654, inf
    %v673 = vsel %vm309, %v659, inf
    %v674 = vsel %vm310, %v664, inf
    %v675 = vsel %vm311, %v669, inf
    %v676 = vmin.f32 %v672, %v673
    %v677 = vmin.f32 %v674, %v675
    %v678 = vmin.f32 %v676, %v677
    %679 = vmin.xlane.f32.xlu0 %v678
    %v680 = vpop.xlane.xlu0 %679
    %v681 = vrot.slane %v680, 4
    %v682 = vmin.f32 %v680, %v681
    %v683 = vrot.slane %v682, 2
    %v684 = vmin.f32 %v682, %v683
    %v685 = vrot.slane %v684, 1
    %v686 = vmin.f32 %v684, %v685
    %s687 = vtos %v686
    %s688 = scalar_lea.smem [#allocation5], 256
    %689 = sst [smem:[%s688]] %s687
    %v690 = vsel %vm308, %v654, -inf
    %v691 = vsel %vm309, %v659, -inf
    %v692 = vsel %vm310, %v664, -inf
    %v693 = vsel %vm311, %v669, -inf
    %v694 = vmax.f32 %v690, %v691
    %v695 = vmax.f32 %v692, %v693
    %v696 = vmax.f32 %v694, %v695
    %697 = vmax.xlane.f32.xlu0 %v696
    %v698 = vpop.xlane.xlu0 %697
    %v699 = vrot.slane %v698, 4
    %v700 = vmax.f32 %v698, %v699
    %v701 = vrot.slane %v700, 2
    %v702 = vmax.f32 %v700, %v701
    %v703 = vrot.slane %v702, 1
    %v704 = vmax.f32 %v702, %v703
    %s705 = vtos %v704
    %s706 = scalar_lea.smem [#allocation5], 257
    %707 = sst [smem:[%s706]] %s705
    %s708 = scalar_lea.vmem [#allocation2], 32
    %709 = vst.msk [vmem:[%s708] sm:$0xff] %vm442, %v654
    %710 = vst.msk [vmem:[%s708 + $0x8] sm:$0xff] %vm442, %v659
    %v711 = vld [vmem:[%s0 + $0x3] sm:$0x1]
    %v712 = vlaneseq
    %v713 = vshrl.u32 %v712, 7
    %v714 = vsub.s32 0, %v713
    %v715 = vrot.slane %v711, %v714
    %v716 = vmul.f32 %v83, %v715
    %v717 = vmul.f32 %v84, %v715
    %v718 = vmul.f32 %v85, %v715
    %v719 = vmul.f32 %v86, %v715
    %720 = vmatprep.subr.mxu0 0.0
    %721 = vmatpush1.msra.mxu0 %v266
    %722 = vmatprep.subr.mxu0 0.0
    %723 = vmatpush1.msra.mxu0 %v265
    %724 = vmatprep.subr.mxu0 0.0
    %725 = vmatpush1.msra.mxu0 %v264
    %726 = vmatprep.subr.mxu0 0.0
    %727 = vmatpush1.msra.mxu0 %v263
    %728 = vmatprep.subr.mxu0 0.0
    %729 = vmatpush1.msra.mxu0 %v262
    %730 = vmatprep.subr.mxu0 0.0
    %731 = vmatpush1.msra.mxu0 %v261
    %732 = vmatprep.subr.mxu0 0.0
    %733 = vmatpush1.msra.mxu0 %v260
    %734 = vmatprep.subr.mxu0 0.0
    %735 = vmatpush1.msra.mxu0 %v259
    %736 = vmatprep.subr.mxu0 0.0
    %737 = vmatpush1.msra.mxu0 %v258
    %738 = vmatprep.subr.mxu0 0.0
    %739 = vmatpush1.msra.mxu0 %v257
    %740 = vmatprep.subr.mxu0 0.0
    %741 = vmatpush1.msra.mxu0 %v256
    %742 = vmatprep.subr.mxu0 0.0
    %743 = vmatpush1.msra.mxu0 %v255
    %744 = vmatprep.subr.mxu0 0.0
    %745 = vmatpush1.msra.mxu0 %v254
    %746 = vmatprep.subr.mxu0 0.0
    %747 = vmatpush1.msra.mxu0 %v253
    %748 = vmatprep.subr.mxu0 0.0
    %749 = vmatpush1.msra.mxu0 %v252
    %750 = vmatprep.subr.mxu0 0.0
    %751 = vmatpush1.msra.mxu0 %v251
    %752 = vmatprep.subr.mxu0 0.0
    %753 = vmatpush2.msra.mxu0 0.0
    %754 = vmatprep.subr.mxu0 0.0
    %755 = vmatpush2.msra.mxu0 0.0
    %756 = vmatprep.subr.mxu0 0.0
    %757 = vmatpush2.msra.mxu0 0.0
    %758 = vmatprep.subr.mxu0 0.0
    %759 = vmatpush2.msra.mxu0 0.0
    %760 = vmatprep.subr.mxu0 0.0
    %761 = vmatpush2.msra.mxu0 0.0
    %762 = vmatprep.subr.mxu0 0.0
    %763 = vmatpush2.msra.mxu0 0.0
    %764 = vmatprep.subr.mxu0 0.0
    %765 = vmatpush2.msra.mxu0 0.0
    %766 = vmatprep.subr.mxu0 0.0
    %767 = vmatpush2.msra.mxu0 0.0
    %768 = vmatprep.subr.mxu0 0.0
    %769 = vmatpush2.msra.mxu0 0.0
    %770 = vmatprep.subr.mxu0 0.0
    %771 = vmatpush2.msra.mxu0 0.0
    %772 = vmatprep.subr.mxu0 0.0
    %773 = vmatpush2.msra.mxu0 0.0
    %774 = vmatprep.subr.mxu0 0.0
    %775 = vmatpush2.msra.mxu0 0.0
    %776 = vmatprep.subr.mxu0 0.0
    %777 = vmatpush2.msra.mxu0 0.0
    %778 = vmatprep.subr.mxu0 0.0
    %779 = vmatpush2.msra.mxu0 0.0
    %780 = vmatprep.subr.mxu0 0.0
    %781 = vmatpush2.msra.mxu0 0.0
    %782 = vmatprep.subr.mxu0 0.0
    %783 = vmatpush2.msra.mxu0 0.0
    %784 = vmatprep.mubr.f32.mxu0 0.0
    %785 = vmatmul.mubr.f32.gmra.mxu0 %v716
    %v786 = vpop.f32.mrf.mxu0
    %v787 = vadd.f32 0.0, %v786
    %v788 = vpop.f32.mrf.mxu0
    %789 = vmatprep.mubr.f32.mxu0 0.0
    %790 = vmatmul.mubr.f32.gmra.mxu0 %v717
    %v791 = vpop.f32.mrf.mxu0
    %v792 = vadd.f32 0.0, %v791
    %v793 = vpop.f32.mrf.mxu0
    %794 = vmatprep.mubr.f32.mxu0 0.0
    %795 = vmatmul.mubr.f32.gmra.mxu0 %v718
    %v796 = vpop.f32.mrf.mxu0
    %v797 = vadd.f32 0.0, %v796
    %v798 = vpop.f32.mrf.mxu0
    %799 = vmatprep.mubr.f32.mxu0 0.0
    %800 = vmatmul.mubr.f32.gmra.mxu0 %v719
    %v801 = vpop.f32.mrf.mxu0
    %v802 = vadd.f32 0.0, %v801
    %v803 = vpop.f32.mrf.mxu0
    %804 = vdwg.mxu0
    %v805 = vsel %vm308, %v787, inf
    %v806 = vsel %vm309, %v792, inf
    %v807 = vsel %vm310, %v797, inf
    %v808 = vsel %vm311, %v802, inf
    %v809 = vmin.f32 %v805, %v806
    %v810 = vmin.f32 %v807, %v808
    %v811 = vmin.f32 %v809, %v810
    %812 = vmin.xlane.f32.xlu0 %v811
    %v813 = vpop.xlane.xlu0 %812
    %v814 = vrot.slane %v813, 4
    %v815 = vmin.f32 %v813, %v814
    %v816 = vrot.slane %v815, 2
    %v817 = vmin.f32 %v815, %v816
    %v818 = vrot.slane %v817, 1
    %v819 = vmin.f32 %v817, %v818
    %s820 = vtos %v819
    %s821 = scalar_lea.smem [#allocation5], 384
    %822 = sst [smem:[%s821]] %s820
    %v823 = vsel %vm308, %v787, -inf
    %v824 = vsel %vm309, %v792, -inf
    %v825 = vsel %vm310, %v797, -inf
    %v826 = vsel %vm311, %v802, -inf
    %v827 = vmax.f32 %v823, %v824
    %v828 = vmax.f32 %v825, %v826
    %v829 = vmax.f32 %v827, %v828
    %830 = vmax.xlane.f32.xlu0 %v829
    %v831 = vpop.xlane.xlu0 %830
    %v832 = vrot.slane %v831, 4
    %v833 = vmax.f32 %v831, %v832
    %v834 = vrot.slane %v833, 2
    %v835 = vmax.f32 %v833, %v834
    %v836 = vrot.slane %v835, 1
    %v837 = vmax.f32 %v835, %v836
    %s838 = vtos %v837
    %s839 = scalar_lea.smem [#allocation5], 385
    %840 = sst [smem:[%s839]] %s838
    %s841 = scalar_lea.vmem [#allocation2], 48
    %842 = vst.msk [vmem:[%s841] sm:$0xff] %vm442, %v787
    %843 = vst.msk [vmem:[%s841 + $0x8] sm:$0xff] %vm442, %v792
    %v844 = vld [vmem:[%s0 + $0x4] sm:$0x1]
    %v845 = vlaneseq
    %v846 = vshrl.u32 %v845, 7
    %v847 = vsub.s32 0, %v846
    %v848 = vrot.slane %v844, %v847
    %v849 = vmul.f32 %v83, %v848
    %v850 = vmul.f32 %v84, %v848
    %v851 = vmul.f32 %v85, %v848
    %v852 = vmul.f32 %v86, %v848
    %853 = vmatprep.subr.mxu0 0.0
    %854 = vmatpush1.msra.mxu0 %v266
    %855 = vmatprep.subr.mxu0 0.0
    %856 = vmatpush1.msra.mxu0 %v265
    %857 = vmatprep.subr.mxu0 0.0
    %858 = vmatpush1.msra.mxu0 %v264
    %859 = vmatprep.subr.mxu0 0.0
    %860 = vmatpush1.msra.mxu0 %v263
    %861 = vmatprep.subr.mxu0 0.0
    %862 = vmatpush1.msra.mxu0 %v262
    %863 = vmatprep.subr.mxu0 0.0
    %864 = vmatpush1.msra.mxu0 %v261
    %865 = vmatprep.subr.mxu0 0.0
    %866 = vmatpush1.msra.mxu0 %v260
    %867 = vmatprep.subr.mxu0 0.0
    %868 = vmatpush1.msra.mxu0 %v259
    %869 = vmatprep.subr.mxu0 0.0
    %870 = vmatpush1.msra.mxu0 %v258
    %871 = vmatprep.subr.mxu0 0.0
    %872 = vmatpush1.msra.mxu0 %v257
    %873 = vmatprep.subr.mxu0 0.0
    %874 = vmatpush1.msra.mxu0 %v256
    %875 = vmatprep.subr.mxu0 0.0
    %876 = vmatpush1.msra.mxu0 %v255
    %877 = vmatprep.subr.mxu0 0.0
    %878 = vmatpush1.msra.mxu0 %v254
    %879 = vmatprep.subr.mxu0 0.0
    %880 = vmatpush1.msra.mxu0 %v253
    %881 = vmatprep.subr.mxu0 0.0
    %882 = vmatpush1.msra.mxu0 %v252
    %883 = vmatprep.subr.mxu0 0.0
    %884 = vmatpush1.msra.mxu0 %v251
    %885 = vmatprep.subr.mxu0 0.0
    %886 = vmatpush2.msra.mxu0 0.0
    %887 = vmatprep.subr.mxu0 0.0
    %888 = vmatpush2.msra.mxu0 0.0
    %889 = vmatprep.subr.mxu0 0.0
    %890 = vmatpush2.msra.mxu0 0.0
    %891 = vmatprep.subr.mxu0 0.0
    %892 = vmatpush2.msra.mxu0 0.0
    %893 = vmatprep.subr.mxu0 0.0
    %894 = vmatpush2.msra.mxu0 0.0
    %895 = vmatprep.subr.mxu0 0.0
    %896 = vmatpush2.msra.mxu0 0.0
    %897 = vmatprep.subr.mxu0 0.0
    %898 = vmatpush2.msra.mxu0 0.0
    %899 = vmatprep.subr.mxu0 0.0
    %900 = vmatpush2.msra.mxu0 0.0
    %901 = vmatprep.subr.mxu0 0.0
    %902 = vmatpush2.msra.mxu0 0.0
    %903 = vmatprep.subr.mxu0 0.0
    %904 = vmatpush2.msra.mxu0 0.0
    %905 = vmatprep.subr.mxu0 0.0
    %906 = vmatpush2.msra.mxu0 0.0
    %907 = vmatprep.subr.mxu0 0.0
    %908 = vmatpush2.msra.mxu0 0.0
    %909 = vmatprep.subr.mxu0 0.0
    %910 = vmatpush2.msra.mxu0 0.0
    %911 = vmatprep.subr.mxu0 0.0
    %912 = vmatpush2.msra.mxu0 0.0
    %913 = vmatprep.subr.mxu0 0.0
    %914 = vmatpush2.msra.mxu0 0.0
    %915 = vmatprep.subr.mxu0 0.0
    %916 = vmatpush2.msra.mxu0 0.0
    %917 = vmatprep.mubr.f32.mxu0 0.0
    %918 = vmatmul.mubr.f32.gmra.mxu0 %v849
    %v919 = vpop.f32.mrf.mxu0
    %v920 = vadd.f32 0.0, %v919
    %v921 = vpop.f32.mrf.mxu0
    %922 = vmatprep.mubr.f32.mxu0 0.0
    %923 = vmatmul.mubr.f32.gmra.mxu0 %v850
    %v924 = vpop.f32.mrf.mxu0
    %v925 = vadd.f32 0.0, %v924
    %v926 = vpop.f32.mrf.mxu0
    %927 = vmatprep.mubr.f32.mxu0 0.0
    %928 = vmatmul.mubr.f32.gmra.mxu0 %v851
    %v929 = vpop.f32.mrf.mxu0
    %v930 = vadd.f32 0.0, %v929
    %v931 = vpop.f32.mrf.mxu0
    %932 = vmatprep.mubr.f32.mxu0 0.0
    %933 = vmatmul.mubr.f32.gmra.mxu0 %v852
    %v934 = vpop.f32.mrf.mxu0
    %v935 = vadd.f32 0.0, %v934
    %v936 = vpop.f32.mrf.mxu0
    %937 = vdwg.mxu0
    %v938 = vsel %vm308, %v920, inf
    %v939 = vsel %vm309, %v925, inf
    %v940 = vsel %vm310, %v930, inf
    %v941 = vsel %vm311, %v935, inf
    %v942 = vmin.f32 %v938, %v939
    %v943 = vmin.f32 %v940, %v941
    %v944 = vmin.f32 %v942, %v943
    %945 = vmin.xlane.f32.xlu0 %v944
    %v946 = vpop.xlane.xlu0 %945
    %v947 = vrot.slane %v946, 4
    %v948 = vmin.f32 %v946, %v947
    %v949 = vrot.slane %v948, 2
    %v950 = vmin.f32 %v948, %v949
    %v951 = vrot.slane %v950, 1
    %v952 = vmin.f32 %v950, %v951
    %s953 = vtos %v952
    %s954 = scalar_lea.smem [#allocation5], 512
    %955 = sst [smem:[%s954]] %s953
    %v956 = vsel %vm308, %v920, -inf
    %v957 = vsel %vm309, %v925, -inf
    %v958 = vsel %vm310, %v930, -inf
    %v959 = vsel %vm311, %v935, -inf
    %v960 = vmax.f32 %v956, %v957
    %v961 = vmax.f32 %v958, %v959
    %v962 = vmax.f32 %v960, %v961
    %963 = vmax.xlane.f32.xlu0 %v962
    %v964 = vpop.xlane.xlu0 %963
    %v965 = vrot.slane %v964, 4
    %v966 = vmax.f32 %v964, %v965
    %v967 = vrot.slane %v966, 2
    %v968 = vmax.f32 %v966, %v967
    %v969 = vrot.slane %v968, 1
    %v970 = vmax.f32 %v968, %v969
    %s971 = vtos %v970
    %s972 = scalar_lea.smem [#allocation5], 513
    %973 = sst [smem:[%s972]] %s971
    %s974 = scalar_lea.vmem [#allocation2], 64
    %975 = vst.msk [vmem:[%s974] sm:$0xff] %vm442, %v920
    %976 = vst.msk [vmem:[%s974 + $0x8] sm:$0xff] %vm442, %v925
    %v977 = vld [vmem:[%s0 + $0x5] sm:$0x1]
    %v978 = vlaneseq
    %v979 = vshrl.u32 %v978, 7
    %v980 = vsub.s32 0, %v979
    %v981 = vrot.slane %v977, %v980
    %v982 = vmul.f32 %v83, %v981
    %v983 = vmul.f32 %v84, %v981
    %v984 = vmul.f32 %v85, %v981
    %v985 = vmul.f32 %v86, %v981
    %986 = vmatprep.subr.mxu0 0.0
    %987 = vmatpush1.msra.mxu0 %v266
    %988 = vmatprep.subr.mxu0 0.0
    %989 = vmatpush1.msra.mxu0 %v265
    %990 = vmatprep.subr.mxu0 0.0
    %991 = vmatpush1.msra.mxu0 %v264
    %992 = vmatprep.subr.mxu0 0.0
    %993 = vmatpush1.msra.mxu0 %v263
    %994 = vmatprep.subr.mxu0 0.0
    %995 = vmatpush1.msra.mxu0 %v262
    %996 = vmatprep.subr.mxu0 0.0
    %997 = vmatpush1.msra.mxu0 %v261
    %998 = vmatprep.subr.mxu0 0.0
    %999 = vmatpush1.msra.mxu0 %v260
    %1000 = vmatprep.subr.mxu0 0.0
    %1001 = vmatpush1.msra.mxu0 %v259
    %1002 = vmatprep.subr.mxu0 0.0
    %1003 = vmatpush1.msra.mxu0 %v258
    %1004 = vmatprep.subr.mxu0 0.0
    %1005 = vmatpush1.msra.mxu0 %v257
    %1006 = vmatprep.subr.mxu0 0.0
    %1007 = vmatpush1.msra.mxu0 %v256
    %1008 = vmatprep.subr.mxu0 0.0
    %1009 = vmatpush1.msra.mxu0 %v255
    %1010 = vmatprep.subr.mxu0 0.0
    %1011 = vmatpush1.msra.mxu0 %v254
    %1012 = vmatprep.subr.mxu0 0.0
    %1013 = vmatpush1.msra.mxu0 %v253
    %1014 = vmatprep.subr.mxu0 0.0
    %1015 = vmatpush1.msra.mxu0 %v252
    %1016 = vmatprep.subr.mxu0 0.0
    %1017 = vmatpush1.msra.mxu0 %v251
    %1018 = vmatprep.subr.mxu0 0.0
    %1019 = vmatpush2.msra.mxu0 0.0
    %1020 = vmatprep.subr.mxu0 0.0
    %1021 = vmatpush2.msra.mxu0 0.0
    %1022 = vmatprep.subr.mxu0 0.0
    %1023 = vmatpush2.msra.mxu0 0.0
    %1024 = vmatprep.subr.mxu0 0.0
    %1025 = vmatpush2.msra.mxu0 0.0
    %1026 = vmatprep.subr.mxu0 0.0
    %1027 = vmatpush2.msra.mxu0 0.0
    %1028 = vmatprep.subr.mxu0 0.0
    %1029 = vmatpush2.msra.mxu0 0.0
    %1030 = vmatprep.subr.mxu0 0.0
    %1031 = vmatpush2.msra.mxu0 0.0
    %1032 = vmatprep.subr.mxu0 0.0
    %1033 = vmatpush2.msra.mxu0 0.0
    %1034 = vmatprep.subr.mxu0 0.0
    %1035 = vmatpush2.msra.mxu0 0.0
    %1036 = vmatprep.subr.mxu0 0.0
    %1037 = vmatpush2.msra.mxu0 0.0
    %1038 = vmatprep.subr.mxu0 0.0
    %1039 = vmatpush2.msra.mxu0 0.0
    %1040 = vmatprep.subr.mxu0 0.0
    %1041 = vmatpush2.msra.mxu0 0.0
    %1042 = vmatprep.subr.mxu0 0.0
    %1043 = vmatpush2.msra.mxu0 0.0
    %1044 = vmatprep.subr.mxu0 0.0
    %1045 = vmatpush2.msra.mxu0 0.0
    %1046 = vmatprep.subr.mxu0 0.0
    %1047 = vmatpush2.msra.mxu0 0.0
    %1048 = vmatprep.subr.mxu0 0.0
    %1049 = vmatpush2.msra.mxu0 0.0
    %1050 = vmatprep.mubr.f32.mxu0 0.0
    %1051 = vmatmul.mubr.f32.gmra.mxu0 %v982
    %v1052 = vpop.f32.mrf.mxu0
    %v1053 = vadd.f32 0.0, %v1052
    %v1054 = vpop.f32.mrf.mxu0
    %1055 = vmatprep.mubr.f32.mxu0 0.0
    %1056 = vmatmul.mubr.f32.gmra.mxu0 %v983
    %v1057 = vpop.f32.mrf.mxu0
    %v1058 = vadd.f32 0.0, %v1057
    %v1059 = vpop.f32.mrf.mxu0
    %1060 = vmatprep.mubr.f32.mxu0 0.0
    %1061 = vmatmul.mubr.f32.gmra.mxu0 %v984
    %v1062 = vpop.f32.mrf.mxu0
    %v1063 = vadd.f32 0.0, %v1062
    %v1064 = vpop.f32.mrf.mxu0
    %1065 = vmatprep.mubr.f32.mxu0 0.0
    %1066 = vmatmul.mubr.f32.gmra.mxu0 %v985
    %v1067 = vpop.f32.mrf.mxu0
    %v1068 = vadd.f32 0.0, %v1067
    %v1069 = vpop.f32.mrf.mxu0
    %1070 = vdwg.mxu0
    %v1071 = vsel %vm308, %v1053, inf
    %v1072 = vsel %vm309, %v1058, inf
    %v1073 = vsel %vm310, %v1063, inf
    %v1074 = vsel %vm311, %v1068, inf
    %v1075 = vmin.f32 %v1071, %v1072
    %v1076 = vmin.f32 %v1073, %v1074
    %v1077 = vmin.f32 %v1075, %v1076
    %1078 = vmin.xlane.f32.xlu0 %v1077
    %v1079 = vpop.xlane.xlu0 %1078
    %v1080 = vrot.slane %v1079, 4
    %v1081 = vmin.f32 %v1079, %v1080
    %v1082 = vrot.slane %v1081, 2
    %v1083 = vmin.f32 %v1081, %v1082
    %v1084 = vrot.slane %v1083, 1
    %v1085 = vmin.f32 %v1083, %v1084
    %s1086 = vtos %v1085
    %s1087 = scalar_lea.smem [#allocation5], 640
    %1088 = sst [smem:[%s1087]] %s1086
    %v1089 = vsel %vm308, %v1053, -inf
    %v1090 = vsel %vm309, %v1058, -inf
    %v1091 = vsel %vm310, %v1063, -inf
    %v1092 = vsel %vm311, %v1068, -inf
    %v1093 = vmax.f32 %v1089, %v1090
    %v1094 = vmax.f32 %v1091, %v1092
    %v1095 = vmax.f32 %v1093, %v1094
    %1096 = vmax.xlane.f32.xlu0 %v1095
    %v1097 = vpop.xlane.xlu0 %1096
    %v1098 = vrot.slane %v1097, 4
    %v1099 = vmax.f32 %v1097, %v1098
    %v1100 = vrot.slane %v1099, 2
    %v1101 = vmax.f32 %v1099, %v1100
    %v1102 = vrot.slane %v1101, 1
    %v1103 = vmax.f32 %v1101, %v1102
    %s1104 = vtos %v1103
    %s1105 = scalar_lea.smem [#allocation5], 641
    %1106 = sst [smem:[%s1105]] %s1104
    %s1107 = scalar_lea.vmem [#allocation2], 80
    %1108 = vst.msk [vmem:[%s1107] sm:$0xff] %vm442, %v1053
    %1109 = vst.msk [vmem:[%s1107 + $0x8] sm:$0xff] %vm442, %v1058
    %v1110 = vld [vmem:[%s0 + $0x6] sm:$0x1]
    %v1111 = vlaneseq
    %v1112 = vshrl.u32 %v1111, 7
    %v1113 = vsub.s32 0, %v1112
    %v1114 = vrot.slane %v1110, %v1113
    %v1115 = vmul.f32 %v83, %v1114
    %v1116 = vmul.f32 %v84, %v1114
    %v1117 = vmul.f32 %v85, %v1114
    %v1118 = vmul.f32 %v86, %v1114
    %1119 = vmatprep.subr.mxu0 0.0
    %1120 = vmatpush1.msra.mxu0 %v266
    %1121 = vmatprep.subr.mxu0 0.0
    %1122 = vmatpush1.msra.mxu0 %v265
    %1123 = vmatprep.subr.mxu0 0.0
    %1124 = vmatpush1.msra.mxu0 %v264
    %1125 = vmatprep.subr.mxu0 0.0
    %1126 = vmatpush1.msra.mxu0 %v263
    %1127 = vmatprep.subr.mxu0 0.0
    %1128 = vmatpush1.msra.mxu0 %v262
    %1129 = vmatprep.subr.mxu0 0.0
    %1130 = vmatpush1.msra.mxu0 %v261
    %1131 = vmatprep.subr.mxu0 0.0
    %1132 = vmatpush1.msra.mxu0 %v260
    %1133 = vmatprep.subr.mxu0 0.0
    %1134 = vmatpush1.msra.mxu0 %v259
    %1135 = vmatprep.subr.mxu0 0.0
    %1136 = vmatpush1.msra.mxu0 %v258
    %1137 = vmatprep.subr.mxu0 0.0
    %1138 = vmatpush1.msra.mxu0 %v257
    %1139 = vmatprep.subr.mxu0 0.0
    %1140 = vmatpush1.msra.mxu0 %v256
    %1141 = vmatprep.subr.mxu0 0.0
    %1142 = vmatpush1.msra.mxu0 %v255
    %1143 = vmatprep.subr.mxu0 0.0
    %1144 = vmatpush1.msra.mxu0 %v254
    %1145 = vmatprep.subr.mxu0 0.0
    %1146 = vmatpush1.msra.mxu0 %v253
    %1147 = vmatprep.subr.mxu0 0.0
    %1148 = vmatpush1.msra.mxu0 %v252
    %1149 = vmatprep.subr.mxu0 0.0
    %1150 = vmatpush1.msra.mxu0 %v251
    %1151 = vmatprep.subr.mxu0 0.0
    %1152 = vmatpush2.msra.mxu0 0.0
    %1153 = vmatprep.subr.mxu0 0.0
    %1154 = vmatpush2.msra.mxu0 0.0
    %1155 = vmatprep.subr.mxu0 0.0
    %1156 = vmatpush2.msra.mxu0 0.0
    %1157 = vmatprep.subr.mxu0 0.0
    %1158 = vmatpush2.msra.mxu0 0.0
    %1159 = vmatprep.subr.mxu0 0.0
    %1160 = vmatpush2.msra.mxu0 0.0
    %1161 = vmatprep.subr.mxu0 0.0
    %1162 = vmatpush2.msra.mxu0 0.0
    %1163 = vmatprep.subr.mxu0 0.0
    %1164 = vmatpush2.msra.mxu0 0.0
    %1165 = vmatprep.subr.mxu0 0.0
    %1166 = vmatpush2.msra.mxu0 0.0
    %1167 = vmatprep.subr.mxu0 0.0
    %1168 = vmatpush2.msra.mxu0 0.0
    %1169 = vmatprep.subr.mxu0 0.0
    %1170 = vmatpush2.msra.mxu0 0.0
    %1171 = vmatprep.subr.mxu0 0.0
    %1172 = vmatpush2.msra.mxu0 0.0
    %1173 = vmatprep.subr.mxu0 0.0
    %1174 = vmatpush2.msra.mxu0 0.0
    %1175 = vmatprep.subr.mxu0 0.0
    %1176 = vmatpush2.msra.mxu0 0.0
    %1177 = vmatprep.subr.mxu0 0.0
    %1178 = vmatpush2.msra.mxu0 0.0
    %1179 = vmatprep.subr.mxu0 0.0
    %1180 = vmatpush2.msra.mxu0 0.0
    %1181 = vmatprep.subr.mxu0 0.0
    %1182 = vmatpush2.msra.mxu0 0.0
    %1183 = vmatprep.mubr.f32.mxu0 0.0
    %1184 = vmatmul.mubr.f32.gmra.mxu0 %v1115
    %v1185 = vpop.f32.mrf.mxu0
    %v1186 = vadd.f32 0.0, %v1185
    %v1187 = vpop.f32.mrf.mxu0
    %1188 = vmatprep.mubr.f32.mxu0 0.0
    %1189 = vmatmul.mubr.f32.gmra.mxu0 %v1116
    %v1190 = vpop.f32.mrf.mxu0
    %v1191 = vadd.f32 0.0, %v1190
    %v1192 = vpop.f32.mrf.mxu0
    %1193 = vmatprep.mubr.f32.mxu0 0.0
    %1194 = vmatmul.mubr.f32.gmra.mxu0 %v1117
    %v1195 = vpop.f32.mrf.mxu0
    %v1196 = vadd.f32 0.0, %v1195
    %v1197 = vpop.f32.mrf.mxu0
    %1198 = vmatprep.mubr.f32.mxu0 0.0
    %1199 = vmatmul.mubr.f32.gmra.mxu0 %v1118
    %v1200 = vpop.f32.mrf.mxu0
    %v1201 = vadd.f32 0.0, %v1200
    %v1202 = vpop.f32.mrf.mxu0
    %1203 = vdwg.mxu0
    %v1204 = vsel %vm308, %v1186, inf
    %v1205 = vsel %vm309, %v1191, inf
    %v1206 = vsel %vm310, %v1196, inf
    %v1207 = vsel %vm311, %v1201, inf
    %v1208 = vmin.f32 %v1204, %v1205
    %v1209 = vmin.f32 %v1206, %v1207
    %v1210 = vmin.f32 %v1208, %v1209
    %1211 = vmin.xlane.f32.xlu0 %v1210
    %v1212 = vpop.xlane.xlu0 %1211
    %v1213 = vrot.slane %v1212, 4
    %v1214 = vmin.f32 %v1212, %v1213
    %v1215 = vrot.slane %v1214, 2
    %v1216 = vmin.f32 %v1214, %v1215
    %v1217 = vrot.slane %v1216, 1
    %v1218 = vmin.f32 %v1216, %v1217
    %s1219 = vtos %v1218
    %s1220 = scalar_lea.smem [#allocation5], 768
    %1221 = sst [smem:[%s1220]] %s1219
    %v1222 = vsel %vm308, %v1186, -inf
    %v1223 = vsel %vm309, %v1191, -inf
    %v1224 = vsel %vm310, %v1196, -inf
    %v1225 = vsel %vm311, %v1201, -inf
    %v1226 = vmax.f32 %v1222, %v1223
    %v1227 = vmax.f32 %v1224, %v1225
    %v1228 = vmax.f32 %v1226, %v1227
    %1229 = vmax.xlane.f32.xlu0 %v1228
    %v1230 = vpop.xlane.xlu0 %1229
    %v1231 = vrot.slane %v1230, 4
    %v1232 = vmax.f32 %v1230, %v1231
    %v1233 = vrot.slane %v1232, 2
    %v1234 = vmax.f32 %v1232, %v1233
    %v1235 = vrot.slane %v1234, 1
    %v1236 = vmax.f32 %v1234, %v1235
    %s1237 = vtos %v1236
    %s1238 = scalar_lea.smem [#allocation5], 769
    %1239 = sst [smem:[%s1238]] %s1237
    %s1240 = scalar_lea.vmem [#allocation2], 96
    %1241 = vst.msk [vmem:[%s1240] sm:$0xff] %vm442, %v1186
    %1242 = vst.msk [vmem:[%s1240 + $0x8] sm:$0xff] %vm442, %v1191
    %v1243 = vld [vmem:[%s0 + $0x7] sm:$0x1]
    %v1244 = vlaneseq
    %v1245 = vshrl.u32 %v1244, 7
    %v1246 = vsub.s32 0, %v1245
    %v1247 = vrot.slane %v1243, %v1246
    %v1248 = vmul.f32 %v83, %v1247
    %v1249 = vmul.f32 %v84, %v1247
    %v1250 = vmul.f32 %v85, %v1247
    %v1251 = vmul.f32 %v86, %v1247
    %1252 = vmatprep.subr.mxu0 0.0
    %1253 = vmatpush1.msra.mxu0 %v266
    %1254 = vmatprep.subr.mxu0 0.0
    %1255 = vmatpush1.msra.mxu0 %v265
    %1256 = vmatprep.subr.mxu0 0.0
    %1257 = vmatpush1.msra.mxu0 %v264
    %1258 = vmatprep.subr.mxu0 0.0
    %1259 = vmatpush1.msra.mxu0 %v263
    %1260 = vmatprep.subr.mxu0 0.0
    %1261 = vmatpush1.msra.mxu0 %v262
    %1262 = vmatprep.subr.mxu0 0.0
    %1263 = vmatpush1.msra.mxu0 %v261
    %1264 = vmatprep.subr.mxu0 0.0
    %1265 = vmatpush1.msra.mxu0 %v260
    %1266 = vmatprep.subr.mxu0 0.0
    %1267 = vmatpush1.msra.mxu0 %v259
    %1268 = vmatprep.subr.mxu0 0.0
    %1269 = vmatpush1.msra.mxu0 %v258
    %1270 = vmatprep.subr.mxu0 0.0
    %1271 = vmatpush1.msra.mxu0 %v257
    %1272 = vmatprep.subr.mxu0 0.0
    %1273 = vmatpush1.msra.mxu0 %v256
    %1274 = vmatprep.subr.mxu0 0.0
    %1275 = vmatpush1.msra.mxu0 %v255
    %1276 = vmatprep.subr.mxu0 0.0
    %1277 = vmatpush1.msra.mxu0 %v254
    %1278 = vmatprep.subr.mxu0 0.0
    %1279 = vmatpush1.msra.mxu0 %v253
    %1280 = vmatprep.subr.mxu0 0.0
    %1281 = vmatpush1.msra.mxu0 %v252
    %1282 = vmatprep.subr.mxu0 0.0
    %1283 = vmatpush1.msra.mxu0 %v251
    %1284 = vmatprep.subr.mxu0 0.0
    %1285 = vmatpush2.msra.mxu0 0.0
    %1286 = vmatprep.subr.mxu0 0.0
    %1287 = vmatpush2.msra.mxu0 0.0
    %1288 = vmatprep.subr.mxu0 0.0
    %1289 = vmatpush2.msra.mxu0 0.0
    %1290 = vmatprep.subr.mxu0 0.0
    %1291 = vmatpush2.msra.mxu0 0.0
    %1292 = vmatprep.subr.mxu0 0.0
    %1293 = vmatpush2.msra.mxu0 0.0
    %1294 = vmatprep.subr.mxu0 0.0
    %1295 = vmatpush2.msra.mxu0 0.0
    %1296 = vmatprep.subr.mxu0 0.0
    %1297 = vmatpush2.msra.mxu0 0.0
    %1298 = vmatprep.subr.mxu0 0.0
    %1299 = vmatpush2.msra.mxu0 0.0
    %1300 = vmatprep.subr.mxu0 0.0
    %1301 = vmatpush2.msra.mxu0 0.0
    %1302 = vmatprep.subr.mxu0 0.0
    %1303 = vmatpush2.msra.mxu0 0.0
    %1304 = vmatprep.subr.mxu0 0.0
    %1305 = vmatpush2.msra.mxu0 0.0
    %1306 = vmatprep.subr.mxu0 0.0
    %1307 = vmatpush2.msra.mxu0 0.0
    %1308 = vmatprep.subr.mxu0 0.0
    %1309 = vmatpush2.msra.mxu0 0.0
    %1310 = vmatprep.subr.mxu0 0.0
    %1311 = vmatpush2.msra.mxu0 0.0
    %1312 = vmatprep.subr.mxu0 0.0
    %1313 = vmatpush2.msra.mxu0 0.0
    %1314 = vmatprep.subr.mxu0 0.0
    %1315 = vmatpush2.msra.mxu0 0.0
    %1316 = vmatprep.mubr.f32.mxu0 0.0
    %1317 = vmatmul.mubr.f32.gmra.mxu0 %v1248
    %v1318 = vpop.f32.mrf.mxu0
    %v1319 = vadd.f32 0.0, %v1318
    %v1320 = vpop.f32.mrf.mxu0
    %1321 = vmatprep.mubr.f32.mxu0 0.0
    %1322 = vmatmul.mubr.f32.gmra.mxu0 %v1249
    %v1323 = vpop.f32.mrf.mxu0
    %v1324 = vadd.f32 0.0, %v1323
    %v1325 = vpop.f32.mrf.mxu0
    %1326 = vmatprep.mubr.f32.mxu0 0.0
    %1327 = vmatmul.mubr.f32.gmra.mxu0 %v1250
    %v1328 = vpop.f32.mrf.mxu0
    %v1329 = vadd.f32 0.0, %v1328
    %v1330 = vpop.f32.mrf.mxu0
    %1331 = vmatprep.mubr.f32.mxu0 0.0
    %1332 = vmatmul.mubr.f32.gmra.mxu0 %v1251
    %v1333 = vpop.f32.mrf.mxu0
    %v1334 = vadd.f32 0.0, %v1333
    %v1335 = vpop.f32.mrf.mxu0
    %1336 = vdwg.mxu0
    %v1337 = vsel %vm308, %v1319, inf
    %v1338 = vsel %vm309, %v1324, inf
    %v1339 = vsel %vm310, %v1329, inf
    %v1340 = vsel %vm311, %v1334, inf
    %v1341 = vmin.f32 %v1337, %v1338
    %v1342 = vmin.f32 %v1339, %v1340
    %v1343 = vmin.f32 %v1341, %v1342
    %1344 = vmin.xlane.f32.xlu0 %v1343
    %v1345 = vpop.xlane.xlu0 %1344
    %v1346 = vrot.slane %v1345, 4
    %v1347 = vmin.f32 %v1345, %v1346
    %v1348 = vrot.slane %v1347, 2
    %v1349 = vmin.f32 %v1347, %v1348
    %v1350 = vrot.slane %v1349, 1
    %v1351 = vmin.f32 %v1349, %v1350
    %s1352 = vtos %v1351
    %s1353 = scalar_lea.smem [#allocation5], 896
    %1354 = sst [smem:[%s1353]] %s1352
    %v1355 = vsel %vm308, %v1319, -inf
    %v1356 = vsel %vm309, %v1324, -inf
    %v1357 = vsel %vm310, %v1329, -inf
    %v1358 = vsel %vm311, %v1334, -inf
    %v1359 = vmax.f32 %v1355, %v1356
    %v1360 = vmax.f32 %v1357, %v1358
    %v1361 = vmax.f32 %v1359, %v1360
    %1362 = vmax.xlane.f32.xlu0 %v1361
    %v1363 = vpop.xlane.xlu0 %1362
    %v1364 = vrot.slane %v1363, 4
    %v1365 = vmax.f32 %v1363, %v1364
    %v1366 = vrot.slane %v1365, 2
    %v1367 = vmax.f32 %v1365, %v1366
    %v1368 = vrot.slane %v1367, 1
    %v1369 = vmax.f32 %v1367, %v1368
    %s1370 = vtos %v1369
    %s1371 = scalar_lea.smem [#allocation5], 897
    %1372 = sst [smem:[%s1371]] %s1370
    %s1373 = scalar_lea.vmem [#allocation2], 112
    %1374 = vst.msk [vmem:[%s1373] sm:$0xff] %vm442, %v1319
    %1375 = vst.msk [vmem:[%s1373 + $0x8] sm:$0xff] %vm442, %v1324
    // Predicated region
    $region22: #{tpu_custom_call.1} parent=1 // pred_check
      _
    $region23: #{tpu_custom_call.1} parent=1 // pred_check_branch
      %1377 = sbr.rel (0) target = $region25
    $region24: #{tpu_custom_call.1} parent=1 // pred_region
      %s1379 = ssub.s32 2048, 2048
      %1380 = vsyncadd [#allocation3], %s1379
      %s1381 = sshll.u32 [#allocation2], 4
      %s1382 = int_to_ptr.vmem [resolvable:$true] %s1381
      %1387 = dma.vmem_to_hbm [thread:$0]  %s1382, 2048, %s5, [#allocation3], 128, 128, 8
    $region25: #{tpu_custom_call.1} parent=1 // pred_fallthru
      _
    // Predicated region
    $region26: #{tpu_custom_call.1} parent=1 // pred_check
      _
    $region27: #{tpu_custom_call.1} parent=1 // pred_check_branch
      %1389 = sbr.rel (0) target = $region29
    $region28: #{tpu_custom_call.1} parent=1 // pred_region
      %s1391 = ssub.s32 128, 128
      %1392 = vsyncadd [#allocation4], %s1391
      %s1394 = sshll.u32 %s6, 4
      %s1395 = int_to_ptr.vmem [resolvable:$true] %s1394
      %1397 = dma.smem_to_vmem [#allocation5], 128, %s1395, [#allocation4]
    $region29: #{tpu_custom_call.1} parent=1 // pred_fallthru
      _
    // Predicated region
    $region30: #{tpu_custom_call.1} parent=1 // pred_check
      _
    $region31: #{tpu_custom_call.1} parent=1 // pred_check_branch
      %1399 = sbr.rel (0) target = $region33
    $region32: #{tpu_custom_call.1} parent=1 // pred_region
      %1400 = dma.done [#allocation3], 2048
    $region33: #{tpu_custom_call.1} parent=1 // pred_fallthru
      _
    // Predicated region
    $region34: #{tpu_custom_call.1} parent=1 // pred_check
      _
    $region35: #{tpu_custom_call.1} parent=1 // pred_check_branch
      %1402 = sbr.rel (0) target = $region37
    $region36: #{tpu_custom_call.1} parent=1 // pred_region
      %1403 = dma.done [#allocation4], 128
    $region37: #{tpu_custom_call.1} parent=1 // pred_fallthru
      _
    %1404 = sfence
    %1405 = vsyncpa [#allocation3], 1
    %1406 = vsyncpa [#allocation4], 1

</llo_original>
